<compile_context>
chip_gen: v7x
topology: tpu7x:2x2x1
jax: 0.10.0
libtpu: 0.0.40
codegen_flags: <defaults>
</compile_context>

<pallas_src>
import functools

import numpy as np

import jax
import jax.numpy as jnp
from jax.experimental import pallas as pl
from jax.experimental.pallas import tpu as pltpu


_TILE_B_MAX = 1024   # amortizes ~0.35us/step overhead; fits v5e's 16 MiB scoped VMEM default
_Q_PAD = 128         # lane-dense output width (>= n_actions)


def _num_tensorcores():
    """Best-effort TensorCores-per-chip count (v7x has 2); defaults to 1."""
    try:
        info = pltpu.get_tpu_info()
        for attr in ("num_cores", "core_count", "num_tensorcores", "tensorcore_count"):
            v = getattr(info, attr, None)
            if isinstance(v, int) and v > 0:
                return int(v)
    except Exception:
        pass
    try:
        return max(1, int(getattr(jax.devices()[0], "num_cores", 1)))
    except Exception:
        return 1


_NUM_CORES = _num_tensorcores()


# ---------------------------------------------------------------------------
# Fused Pallas kernel: conv(as matmul) -> ReLU -> fc1 -> ReLU -> fc_q
# ---------------------------------------------------------------------------
def fused_q_kernel(x_ref, wc_ref, bc_ref, w1_ref, b1_ref, wq_ref, bq_ref, o_ref):
    # x_ref : [TB, C*H*W]       bf16  streamed observation tile
    # wc_ref: [C*H*W, 16*OH*OW] bf16  conv-as-dense-matmul (flatten order baked in)
    # bc_ref: [1, 16*OH*OW]     f32
    # w1_ref: [16*OH*OW, 128]   bf16
    # b1_ref: [1, 128]          f32
    # wq_ref: [128, 128]        bf16  zero-padded from n_actions columns
    # bq_ref: [1, 128]          f32
    # o_ref : [TB, 128]         f32
    h0 = jnp.dot(x_ref[...], wc_ref[...], preferred_element_type=jnp.float32)
    h0 = jnp.maximum(h0 + bc_ref[...], 0.0)                    # conv bias + ReLU (f32 epilogue)
    h1 = jnp.dot(h0.astype(jnp.bfloat16), w1_ref[...],
                 preferred_element_type=jnp.float32)
    h1 = jnp.maximum(h1 + b1_ref[...], 0.0)                    # fc1 bias + ReLU (f32 epilogue)
    q = jnp.dot(h1.astype(jnp.bfloat16), wq_ref[...],
                preferred_element_type=jnp.float32)
    o_ref[...] = q + bq_ref[...]


# ---------------------------------------------------------------------------
# Wrapper
# ---------------------------------------------------------------------------
def _round_up(x, m):
    return (x + m - 1) // m * m


@jax.jit
def soft_q_forward_padded(params, x):
    """x: [B, C, H, W] (NCHW; keep it bf16 upstream — exact for MinAtar binary obs).

    Returns the lane-padded [B, 128] f32 Q tensor; slice [:, :n_actions] at the
    consumer so XLA fuses the slice into the loss instead of a separate HBM pass.
    """
    B = x.shape[0]
    x = x.reshape(B, -1)                                # pure reshape, no data movement
    if x.dtype != jnp.bfloat16:
        # Fallback only: prefer storing observations as bf16 in the replay buffer so
        # this extra XLA cast pass (and 2x input HBM traffic) never happens.
        x = x.astype(jnp.bfloat16)
    in_dim = x.shape[1]

    # Near-even batch tiling: pad to a multiple of 8, pick tiles that divide the batch
    # (capped at _TILE_B_MAX, waste <= 8 rows/tile), and force >= 2 grid steps when a
    # second TensorCore exists so "parallel" semantics can shard the batch (v7x).
    b8 = _round_up(B, 8)
    n_tiles = pl.cdiv(b8, _TILE_B_MAX)
    if _NUM_CORES > 1:
        n_tiles = max(n_tiles, min(_NUM_CORES, b8 // 8))
    tile_b = _round_up(pl.cdiv(b8, n_tiles), 8)
    n_tiles = pl.cdiv(b8, tile_b)
    b_pad = tile_b * n_tiles
    if b_pad != B:
        x = jnp.pad(x, ((0, b_pad - B), (0, 0)))

    wc, bc = params["wc"], params["bc"]
    w1, b1 = params["w1"], params["b1"]
    wq, bq = params["wq"], params["bq"]

    conv_out_dim = wc.shape[1]
    hidden = w1.shape[1]
    flops = 2 * b_pad * (in_dim * conv_out_dim + conv_out_dim * hidden + hidden * _Q_PAD)
    weight_bytes = sum(int(np.prod(p.shape)) * p.dtype.itemsize
                       for p in (wc, bc, w1, b1, wq, bq))
    bytes_accessed = b_pad * in_dim * 2 + weight_bytes + b_pad * _Q_PAD * 4

    out = pl.pallas_call(
        fused_q_kernel,
        out_shape=jax.ShapeDtypeStruct((b_pad, _Q_PAD), jnp.float32),
        grid=(n_tiles,),
        in_specs=[
            pl.BlockSpec((tile_b, in_dim), lambda i: (i, 0)),   # streamed activations
            pl.BlockSpec(wc.shape, lambda i: (0, 0)),           # VMEM-resident weights
            pl.BlockSpec(bc.shape, lambda i: (0, 0)),
            pl.BlockSpec(w1.shape, lambda i: (0, 0)),
            pl.BlockSpec(b1.shape, lambda i: (0, 0)),
            pl.BlockSpec(wq.shape, lambda i: (0, 0)),
            pl.BlockSpec(bq.shape, lambda i: (0, 0)),
        ],
        out_specs=pl.BlockSpec((tile_b, _Q_PAD), lambda i: (i, 0)),
        compiler_params=pltpu.CompilerParams(
            dimension_semantics=("parallel",),   # v7x: shard batch tiles over both TCs
        ),
        cost_estimate=pl.CostEstimate(flops=int(flops), transcendentals=0,
                                      bytes_accessed=int(bytes_accessed)),
    )(x, wc, bc, w1, b1, wq, bq)

    return out[:B]        # slice rows only; keep 128 lanes padded for the consumer


@functools.partial(jax.jit, static_argnames=("n_actions",))
def soft_q_forward(params, x, n_actions):
    """[B, n_actions] convenience wrapper (prefer soft_q_forward_padded and fusing the
    action slice into the downstream loss)."""
    return soft_q_forward_padded(params, x)[:, :n_actions]


# ---------------------------------------------------------------------------
# Parameters (Kaiming-normal weights, zero biases — matches layer_init)
# ---------------------------------------------------------------------------
def _conv_as_dense(w_conv, C, H, W, K):
    """[O,C,K,K] conv weight -> [C*H*W, O*OH*OW] dense matrix computing the valid
    stride-1 conv followed by PyTorch's (C_out, OH, OW) row-major flatten."""
    O = w_conv.shape[0]
    OH, OW = H - K + 1, W - K + 1
    mat = np.zeros((C * H * W, O * OH * OW), np.float32)
    o, c, kh, kw, oh, ow = np.meshgrid(
        np.arange(O), np.arange(C), np.arange(K), np.arange(K),
        np.arange(OH), np.arange(OW), indexing="ij")
    rows = (c * H + oh + kh) * W + (ow + kw)
    cols = (o * OH + oh) * OW + ow
    mat[rows.ravel(), cols.ravel()] = w_conv[o.ravel(), c.ravel(), kh.ravel(), kw.ravel()]
    return mat


def init_params(key, in_channels, h, w, n_actions, k=3, conv_out=16, hidden=128):
    """Returns (kernel_params, raw_params): kernel_params hold the fused / bf16 /
    lane-padded layout consumed by the Pallas kernel; raw_params are plain f32
    PyTorch-layout tensors used only by the pure-JAX reference check."""
    assert n_actions <= _Q_PAD
    oh, ow = h - k + 1, w - k + 1
    flat_dim = conv_out * oh * ow
    k1, k2, k3 = jax.random.split(key, 3)

    w_conv = jax.random.normal(k1, (conv_out, in_channels, k, k), jnp.float32)
    w_conv = w_conv * np.sqrt(2.0 / (in_channels * k * k))
    b_conv = jnp.zeros((conv_out,), jnp.float32)

    w1 = jax.random.normal(k2, (flat_dim, hidden), jnp.float32) * np.sqrt(2.0 / flat_dim)
    b1 = jnp.zeros((hidden,), jnp.float32)

    wq = jax.random.normal(k3, (hidden, n_actions), jnp.float32) * np.sqrt(2.0 / hidden)
    bq = jnp.zeros((n_actions,), jnp.float32)

    raw = dict(w_conv=w_conv, b_conv=b_conv, w1=w1, b1=b1, wq=wq, bq=bq)

    wc_dense = _conv_as_dense(np.asarray(w_conv), in_channels, h, w, k)
    bc_dense = np.repeat(np.asarray(b_conv), oh * ow)[None, :]

    wq_pad = np.zeros((hidden, _Q_PAD), np.float32)
    wq_pad[:, :n_actions] = np.asarray(wq)
    bq_pad = np.zeros((1, _Q_PAD), np.float32)
    bq_pad[0, :n_actions] = np.asarray(bq)

    kparams = dict(
        wc=jnp.asarray(wc_dense, jnp.bfloat16),
        bc=jnp.asarray(bc_dense, jnp.float32),
        w1=jnp.asarray(w1, jnp.bfloat16),
        b1=jnp.asarray(b1, jnp.float32).reshape(1, hidden),
        wq=jnp.asarray(wq_pad, jnp.bfloat16),
        bq=jnp.asarray(bq_pad, jnp.float32),
    )
    return kparams, raw


def reference_forward(raw, x):
    """Pure-JAX f32 reference matching the PyTorch forward (for the self-check)."""
    y = jax.lax.conv_general_dilated(
        x.astype(jnp.float32), raw["w_conv"], window_strides=(1, 1), padding="VALID",
        dimension_numbers=("NCHW", "OIHW", "NCHW"))
    y = y + raw["b_conv"].reshape(1, -1, 1, 1)
    y = jnp.maximum(y, 0.0).reshape(x.shape[0], -1)   # relu(flatten(.)) == flatten(relu(.))
    h = jnp.maximum(y @ raw["w1"] + raw["b1"], 0.0)
    return h @ raw["wq"] + raw["bq"]


if __name__ == "__main__":
    key = jax.random.PRNGKey(0)
    B, C, H, W = 2, 4, 10, 10        # MinAtar-style observation (NCHW)
    n_actions = 6

    k_params, k_x = jax.random.split(key)
    kparams, raw = init_params(k_params, C, H, W, n_actions)

    # MinAtar observations are binary {0,1}; keep them bf16 upstream so the kernel
    # streams half the HBM bytes with zero precision loss (no wrapper-side cast).
    x = jax.random.bernoulli(k_x, 0.3, (B, C, H, W)).astype(jnp.bfloat16)

    q_pad = soft_q_forward_padded(kparams, x)          # [B, 128], lane-padded
    q_pad = jax.block_until_ready(q_pad)
    q = q_pad[:, :n_actions]                           # consumer-side action slice

    assert q_pad.shape == (B, _Q_PAD) and q_pad.dtype == jnp.float32
    assert q.shape == (B, n_actions)
    # Padded action lanes are exactly the zero-padded wq/bq columns.
    assert float(jnp.max(jnp.abs(q_pad[:, n_actions:]))) == 0.0

    # Correctness check vs. f32 reference (bf16 MXU weights -> loose tolerance).
    q_ref = reference_forward(raw, x.astype(jnp.float32))
    err = float(jnp.max(jnp.abs(q - q_ref)))
    assert err < 0.2, f"kernel/reference mismatch: max abs err = {err}"

    # Convenience (sliced) entry point also works.
    q2 = jax.block_until_ready(soft_q_forward(kparams, x, n_actions))
    assert q2.shape == (B, n_actions)

    print("KERNEL_OK")
</pallas_src>

<mosaic_0001>
module attributes {stable_mosaic.version = 11 : i64} {
  func.func @fused_q_kernel(%arg0: i32, %arg1: memref<8x400xbf16, #tpu.memory_space<vmem>>, %arg2: memref<400x1024xbf16, #tpu.memory_space<vmem>>, %arg3: memref<1x1024xf32, #tpu.memory_space<vmem>>, %arg4: memref<1024x128xbf16, #tpu.memory_space<vmem>>, %arg5: memref<1x128xf32, #tpu.memory_space<vmem>>, %arg6: memref<128x128xbf16, #tpu.memory_space<vmem>>, %arg7: memref<1x128xf32, #tpu.memory_space<vmem>>, %arg8: memref<8x128xf32, #tpu.memory_space<vmem>>) attributes {dimension_semantics = [#tpu.dimension_semantics<parallel>], iteration_bounds = array<i64: 1>, scalar_prefetch = 0 : i64, scratch_operands = 0 : i64, tpu.core_type = #tpu.core_type<tc>, window_params = [{transform_indices = @transform_0, window_bounds = array<i64: 8, 400>}, {pipeline_mode = #tpu.pipeline_mode<synchronous>, transform_indices = @transform_1, window_bounds = array<i64: 400, 1024>}, {pipeline_mode = #tpu.pipeline_mode<synchronous>, transform_indices = @transform_2, window_bounds = array<i64: 1, 1024>}, {pipeline_mode = #tpu.pipeline_mode<synchronous>, transform_indices = @transform_3, window_bounds = array<i64: 1024, 128>}, {pipeline_mode = #tpu.pipeline_mode<synchronous>, transform_indices = @transform_4, window_bounds = array<i64: 1, 128>}, {pipeline_mode = #tpu.pipeline_mode<synchronous>, transform_indices = @transform_5, window_bounds = array<i64: 128, 128>}, {pipeline_mode = #tpu.pipeline_mode<synchronous>, transform_indices = @transform_6, window_bounds = array<i64: 1, 128>}, {transform_indices = @transform_7, window_bounds = array<i64: 8, 128>}]} {
    %c0 = arith.constant 0 : index
    %c0_0 = arith.constant 0 : index
    %0 = vector.load %arg1[%c0, %c0_0] : memref<8x400xbf16, #tpu.memory_space<vmem>>, vector<8x400xbf16>
    %c0_1 = arith.constant 0 : index
    %c0_2 = arith.constant 0 : index
    %1 = vector.load %arg2[%c0_1, %c0_2] : memref<400x1024xbf16, #tpu.memory_space<vmem>>, vector<400x1024xbf16>
    %cst = arith.constant dense<0.000000e+00> : vector<8x1024xf32>
    %2 = tpu.matmul %0, %1, %cst {dimension_numbers = #tpu.dot_dimension_numbers<[1], [0], [0], [1], [0, 0, 1, 1], [], []>} : vector<8x400xbf16>, vector<400x1024xbf16>, vector<8x1024xf32> -> vector<8x1024xf32>
    %c0_3 = arith.constant 0 : index
    %c0_4 = arith.constant 0 : index
    %3 = vector.load %arg3[%c0_3, %c0_4] : memref<1x1024xf32, #tpu.memory_space<vmem>>, vector<1x1024xf32>
    %4 = vector.broadcast %3 : vector<1x1024xf32> to vector<8x1024xf32>
    %5 = arith.addf %2, %4 : vector<8x1024xf32>
    %cst_5 = arith.constant 0.000000e+00 : f32
    %6 = vector.broadcast %cst_5 : f32 to vector<8x1024xf32>
    %7 = arith.maximumf %5, %6 : vector<8x1024xf32>
    %8 = arith.truncf %7 : vector<8x1024xf32> to vector<8x1024xbf16>
    %c0_6 = arith.constant 0 : index
    %c0_7 = arith.constant 0 : index
    %9 = vector.load %arg4[%c0_6, %c0_7] : memref<1024x128xbf16, #tpu.memory_space<vmem>>, vector<1024x128xbf16>
    %cst_8 = arith.constant dense<0.000000e+00> : vector<8x128xf32>
    %10 = tpu.matmul %8, %9, %cst_8 {dimension_numbers = #tpu.dot_dimension_numbers<[1], [0], [0], [1], [0, 0, 1, 1], [], []>} : vector<8x1024xbf16>, vector<1024x128xbf16>, vector<8x128xf32> -> vector<8x128xf32>
    %c0_9 = arith.constant 0 : index
    %c0_10 = arith.constant 0 : index
    %11 = vector.load %arg5[%c0_9, %c0_10] : memref<1x128xf32, #tpu.memory_space<vmem>>, vector<1x128xf32>
    %12 = vector.broadcast %11 : vector<1x128xf32> to vector<8x128xf32>
    %13 = arith.addf %10, %12 : vector<8x128xf32>
    %cst_11 = arith.constant 0.000000e+00 : f32
    %14 = vector.broadcast %cst_11 : f32 to vector<8x128xf32>
    %15 = arith.maximumf %13, %14 : vector<8x128xf32>
    %16 = arith.truncf %15 : vector<8x128xf32> to vector<8x128xbf16>
    %c0_12 = arith.constant 0 : index
    %c0_13 = arith.constant 0 : index
    %17 = vector.load %arg6[%c0_12, %c0_13] : memref<128x128xbf16, #tpu.memory_space<vmem>>, vector<128x128xbf16>
    %cst_14 = arith.constant dense<0.000000e+00> : vector<8x128xf32>
    %18 = tpu.matmul %16, %17, %cst_14 {dimension_numbers = #tpu.dot_dimension_numbers<[1], [0], [0], [1], [0, 0, 1, 1], [], []>} : vector<8x128xbf16>, vector<128x128xbf16>, vector<8x128xf32> -> vector<8x128xf32>
    %c0_15 = arith.constant 0 : index
    %c0_16 = arith.constant 0 : index
    %19 = vector.load %arg7[%c0_15, %c0_16] : memref<1x128xf32, #tpu.memory_space<vmem>>, vector<1x128xf32>
    %20 = vector.broadcast %19 : vector<1x128xf32> to vector<8x128xf32>
    %21 = arith.addf %18, %20 : vector<8x128xf32>
    %c0_17 = arith.constant 0 : index
    %c0_18 = arith.constant 0 : index
    %22 = vector.load %arg8[%c0_17, %c0_18] : memref<8x128xf32, #tpu.memory_space<vmem>>, vector<8x128xf32>
    tpu.vector_store %arg8[%c0_17, %c0_18], %21 {strides = array<i32>} : memref<8x128xf32, #tpu.memory_space<vmem>>, vector<8x128xf32>,
    return
  }
  func.func @transform_0(%arg0: i32) -> (i32, i32) {
    %c0_i32 = arith.constant 0 : i32
    %c0_i32_0 = arith.constant 0 : i32
    return %arg0, %c0_i32 : i32, i32
  }
  func.func @transform_1(%arg0: i32) -> (i32, i32) {
    %c0_i32 = arith.constant 0 : i32
    %c0_i32_0 = arith.constant 0 : i32
    %c0_i32_1 = arith.constant 0 : i32
    return %c0_i32, %c0_i32_0 : i32, i32
  }
  func.func @transform_2(%arg0: i32) -> (i32, i32) {
    %c0_i32 = arith.constant 0 : i32
    %c0_i32_0 = arith.constant 0 : i32
    %c0_i32_1 = arith.constant 0 : i32
    return %c0_i32, %c0_i32_0 : i32, i32
  }
  func.func @transform_3(%arg0: i32) -> (i32, i32) {
    %c0_i32 = arith.constant 0 : i32
    %c0_i32_0 = arith.constant 0 : i32
    %c0_i32_1 = arith.constant 0 : i32
    return %c0_i32, %c0_i32_0 : i32, i32
  }
  func.func @transform_4(%arg0: i32) -> (i32, i32) {
    %c0_i32 = arith.constant 0 : i32
    %c0_i32_0 = arith.constant 0 : i32
    %c0_i32_1 = arith.constant 0 : i32
    return %c0_i32, %c0_i32_0 : i32, i32
  }
  func.func @transform_5(%arg0: i32) -> (i32, i32) {
    %c0_i32 = arith.constant 0 : i32
    %c0_i32_0 = arith.constant 0 : i32
    %c0_i32_1 = arith.constant 0 : i32
    return %c0_i32, %c0_i32_0 : i32, i32
  }
  func.func @transform_6(%arg0: i32) -> (i32, i32) {
    %c0_i32 = arith.constant 0 : i32
    %c0_i32_0 = arith.constant 0 : i32
    %c0_i32_1 = arith.constant 0 : i32
    return %c0_i32, %c0_i32_0 : i32, i32
  }
  func.func @transform_7(%arg0: i32) -> (i32, i32) {
    %c0_i32 = arith.constant 0 : i32
    %c0_i32_0 = arith.constant 0 : i32
    return %arg0, %c0_i32 : i32, i32
  }
}

</mosaic_0001>

<llo_original>
// kernel: soft_q_forward_padded.1
$region0: #{soft_q_forward_padded.1}
  #allocation0 [shape = 'u32[]', space=smem, size = 0x4, offset = 0x4, fixed_abs, tag = 'smem constant byte address 0x4 - core index']
  #allocation1 [shape = 'u32[144,128]{1,0:T(1,128)}', space=vmem, size = 0x12000, scoped, tag = 'internal scratch']
  %s0 = inlined_call_operand.vmem [shape: bf16[8,400], index: 0, kind: input, shape index: {}]
  %s1 = inlined_call_operand.hbm [shape: bf16[400,1024], index: 1, kind: input, shape index: {}]
  %s2 = inlined_call_operand.vmem [shape: f32[1,1024], index: 2, kind: input, shape index: {}]
  %s3 = inlined_call_operand.hbm [shape: bf16[1024,128], index: 3, kind: input, shape index: {}]
  %s4 = inlined_call_operand.vmem [shape: f32[1,128], index: 4, kind: input, shape index: {}]
  %s5 = inlined_call_operand.vmem [shape: bf16[128,128], index: 5, kind: input, shape index: {}]
  %s6 = inlined_call_operand.vmem [shape: f32[1,128], index: 6, kind: input, shape index: {}]
  %s7 = inlined_call_operand.vmem [shape: f32[8,128], index: 7, kind: output, shape index: {}]
  %s8 = sld [smem:[#allocation0]]
  $region46: #{soft_q_forward_padded.1} parent=0
    _
  %s10 = ssub.s32 1, %s8
  %s11 = scalar_select 0, %s10, %s8
  $region1: #{soft_q_forward_padded.1} parent=0
    #allocation2 [shape = 'u8[819200]{0}', space=vmem, size = 0xc8000, scoped, tag = 'input window, operand 1, single buffered']
    #allocation3 [shape = 's32[1]{0}', space=sflag, size = 0x4, scoped, tag = 'scoped memory for soft_q_forward_padded.1']
    #allocation4 [shape = 'u8[262144]{0}', space=vmem, size = 0x40000, scoped, tag = 'input window, operand 3, single buffered']
    #allocation5 [shape = 's32[1]{0}', space=sflag, size = 0x4, scoped, tag = 'scoped memory for soft_q_forward_padded.1']
    %12 = vsyncpa [#allocation3], 0
    %13 = vsyncpa [#allocation5], 0
    // Predicated region
    $region2: #{soft_q_forward_padded.1} parent=1 // pred_check
      _
    $region3: #{soft_q_forward_padded.1} parent=1 // pred_check_branch
      %15 = sbr.rel (0) target = $region5
    $region4: #{soft_q_forward_padded.1} parent=1 // pred_region
      _
    $region5: #{soft_q_forward_padded.1} parent=1 // pred_fallthru
      _
    // Predicated region
    $region6: #{soft_q_forward_padded.1} parent=1 // pred_check
      _
    $region7: #{soft_q_forward_padded.1} parent=1 // pred_check_branch
      %17 = sbr.rel (0) target = $region9
    $region8: #{soft_q_forward_padded.1} parent=1 // pred_region
      %s19 = ssub.s32 25600, 25600
      %20 = vsyncadd [#allocation3], %s19
      %s21 = sshll.u32 [#allocation2], 4
      %s22 = int_to_ptr.vmem [resolvable:$true] %s21
      %27 = dma.hbm_to_vmem [thread:$0]  %s1, 25600, %s22, [#allocation3], 512, 512, 32
    $region9: #{soft_q_forward_padded.1} parent=1 // pred_fallthru
      _
    // Predicated region
    $region10: #{soft_q_forward_padded.1} parent=1 // pred_check
      _
    $region11: #{soft_q_forward_padded.1} parent=1 // pred_check_branch
      %29 = sbr.rel (0) target = $region13
    $region12: #{soft_q_forward_padded.1} parent=1 // pred_region
      _
    $region13: #{soft_q_forward_padded.1} parent=1 // pred_fallthru
      _
    // Predicated region
    $region14: #{soft_q_forward_padded.1} parent=1 // pred_check
      _
    $region15: #{soft_q_forward_padded.1} parent=1 // pred_check_branch
      %31 = sbr.rel (0) target = $region17
    $region16: #{soft_q_forward_padded.1} parent=1 // pred_region
      %s33 = ssub.s32 8192, 8192
      %34 = vsyncadd [#allocation5], %s33
      %s35 = sshll.u32 [#allocation4], 4
      %s36 = int_to_ptr.vmem [resolvable:$true] %s35
      %41 = dma.hbm_to_vmem [thread:$0]  %s3, 8192, %s36, [#allocation5], 64, 64, 4
    $region17: #{soft_q_forward_padded.1} parent=1 // pred_fallthru
      _
    // Predicated region
    $region18: #{soft_q_forward_padded.1} parent=1 // pred_check
      _
    $region19: #{soft_q_forward_padded.1} parent=1 // pred_check_branch
      %43 = sbr.rel (0) target = $region21
    $region20: #{soft_q_forward_padded.1} parent=1 // pred_region
      _
    $region21: #{soft_q_forward_padded.1} parent=1 // pred_fallthru
      _
    // Predicated region
    $region22: #{soft_q_forward_padded.1} parent=1 // pred_check
      _
    $region23: #{soft_q_forward_padded.1} parent=1 // pred_check_branch
      %45 = sbr.rel (0) target = $region25
    $region24: #{soft_q_forward_padded.1} parent=1 // pred_region
      _
    $region25: #{soft_q_forward_padded.1} parent=1 // pred_fallthru
      _
    // Predicated region
    $region26: #{soft_q_forward_padded.1} parent=1 // pred_check
      _
    $region27: #{soft_q_forward_padded.1} parent=1 // pred_check_branch
      %47 = sbr.rel (0) target = $region29
    $region28: #{soft_q_forward_padded.1} parent=1 // pred_region
      _
    $region29: #{soft_q_forward_padded.1} parent=1 // pred_fallthru
      _
    // Predicated region
    $region30: #{soft_q_forward_padded.1} parent=1 // pred_check
      _
    $region31: #{soft_q_forward_padded.1} parent=1 // pred_check_branch
      %49 = sbr.rel (0) target = $region33
    $region32: #{soft_q_forward_padded.1} parent=1 // pred_region
      %50 = dma.done [#allocation3], 25600
    $region33: #{soft_q_forward_padded.1} parent=1 // pred_fallthru
      _
    // Predicated region
    $region34: #{soft_q_forward_padded.1} parent=1 // pred_check
      _
    $region35: #{soft_q_forward_padded.1} parent=1 // pred_check_branch
      %52 = sbr.rel (0) target = $region37
    $region36: #{soft_q_forward_padded.1} parent=1 // pred_region
      %53 = dma.done [#allocation5], 8192
    $region37: #{soft_q_forward_padded.1} parent=1 // pred_fallthru
      _
    %v55 = vld [vmem:[%s0] sm:$0xff]
    %v56 = vld [vmem:[%s0 + $0x8] sm:$0xff]
    %v57 = vld [vmem:[#allocation2] sm:$0xff]
    %v58 = vld [vmem:[#allocation2 + $0x8] sm:$0xff]
    %v59 = vld [vmem:[#allocation2 + $0x10] sm:$0xff]
    %v60 = vld [vmem:[#allocation2 + $0x18] sm:$0xff]
    %v61 = vld [vmem:[#allocation2 + $0x20] sm:$0xff]
    %v62 = vld [vmem:[#allocation2 + $0x28] sm:$0xff]
    %v63 = vld [vmem:[#allocation2 + $0x30] sm:$0xff]
    %v64 = vld [vmem:[#allocation2 + $0x38] sm:$0xff]
    %v65 = vld [vmem:[#allocation2 + $0x40] sm:$0xff]
    %v66 = vld [vmem:[#allocation2 + $0x48] sm:$0xff]
    %v67 = vld [vmem:[#allocation2 + $0x50] sm:$0xff]
    %v68 = vld [vmem:[#allocation2 + $0x58] sm:$0xff]
    %v69 = vld [vmem:[#allocation2 + $0x60] sm:$0xff]
    %v70 = vld [vmem:[#allocation2 + $0x68] sm:$0xff]
    %v71 = vld [vmem:[#allocation2 + $0x70] sm:$0xff]
    %v72 = vld [vmem:[#allocation2 + $0x78] sm:$0xff]
    %v73 = vld [vmem:[#allocation2 + $0x80] sm:$0xff]
    %v74 = vld [vmem:[#allocation2 + $0x88] sm:$0xff]
    %v75 = vld [vmem:[#allocation2 + $0x90] sm:$0xff]
    %v76 = vld [vmem:[#allocation2 + $0x98] sm:$0xff]
    %v77 = vld [vmem:[#allocation2 + $0xa0] sm:$0xff]
    %v78 = vld [vmem:[#allocation2 + $0xa8] sm:$0xff]
    %v79 = vld [vmem:[#allocation2 + $0xb0] sm:$0xff]
    %v80 = vld [vmem:[#allocation2 + $0xb8] sm:$0xff]
    %v81 = vld [vmem:[#allocation2 + $0xc0] sm:$0xff]
    %v82 = vld [vmem:[#allocation2 + $0xc8] sm:$0xff]
    %v83 = vld [vmem:[#allocation2 + $0xd0] sm:$0xff]
    %v84 = vld [vmem:[#allocation2 + $0xd8] sm:$0xff]
    %v85 = vld [vmem:[#allocation2 + $0xe0] sm:$0xff]
    %v86 = vld [vmem:[#allocation2 + $0xe8] sm:$0xff]
    %v87 = vld [vmem:[#allocation2 + $0xf0] sm:$0xff]
    %v88 = vld [vmem:[#allocation2 + $0xf8] sm:$0xff]
    %v89 = vld [vmem:[#allocation2 + $0x100] sm:$0xff]
    %v90 = vld [vmem:[#allocation2 + $0x108] sm:$0xff]
    %v91 = vld [vmem:[#allocation2 + $0x110] sm:$0xff]
    %v92 = vld [vmem:[#allocation2 + $0x118] sm:$0xff]
    %v93 = vld [vmem:[#allocation2 + $0x120] sm:$0xff]
    %v94 = vld [vmem:[#allocation2 + $0x128] sm:$0xff]
    %v95 = vld [vmem:[#allocation2 + $0x130] sm:$0xff]
    %v96 = vld [vmem:[#allocation2 + $0x138] sm:$0xff]
    %v97 = vld [vmem:[#allocation2 + $0x140] sm:$0xff]
    %v98 = vld [vmem:[#allocation2 + $0x148] sm:$0xff]
    %v99 = vld [vmem:[#allocation2 + $0x150] sm:$0xff]
    %v100 = vld [vmem:[#allocation2 + $0x158] sm:$0xff]
    %v101 = vld [vmem:[#allocation2 + $0x160] sm:$0xff]
    %v102 = vld [vmem:[#allocation2 + $0x168] sm:$0xff]
    %v103 = vld [vmem:[#allocation2 + $0x170] sm:$0xff]
    %v104 = vld [vmem:[#allocation2 + $0x178] sm:$0xff]
    %v105 = vld [vmem:[#allocation2 + $0x180] sm:$0xff]
    %v106 = vld [vmem:[#allocation2 + $0x188] sm:$0xff]
    %v107 = vld [vmem:[#allocation2 + $0x190] sm:$0xff]
    %v108 = vld [vmem:[#allocation2 + $0x198] sm:$0xff]
    %v109 = vld [vmem:[#allocation2 + $0x1a0] sm:$0xff]
    %v110 = vld [vmem:[#allocation2 + $0x1a8] sm:$0xff]
    %v111 = vld [vmem:[#allocation2 + $0x1b0] sm:$0xff]
    %v112 = vld [vmem:[#allocation2 + $0x1b8] sm:$0xff]
    %v113 = vld [vmem:[#allocation2 + $0x1c0] sm:$0xff]
    %v114 = vld [vmem:[#allocation2 + $0x1c8] sm:$0xff]
    %v115 = vld [vmem:[#allocation2 + $0x1d0] sm:$0xff]
    %v116 = vld [vmem:[#allocation2 + $0x1d8] sm:$0xff]
    %v117 = vld [vmem:[#allocation2 + $0x1e0] sm:$0xff]
    %v118 = vld [vmem:[#allocation2 + $0x1e8] sm:$0xff]
    %v119 = vld [vmem:[#allocation2 + $0x1f0] sm:$0xff]
    %v120 = vld [vmem:[#allocation2 + $0x1f8] sm:$0xff]
    %v121 = vld [vmem:[#allocation2 + $0x200] sm:$0xff]
    %v122 = vld [vmem:[#allocation2 + $0x208] sm:$0xff]
    %v123 = vld [vmem:[#allocation2 + $0x210] sm:$0xff]
    %v124 = vld [vmem:[#allocation2 + $0x218] sm:$0xff]
    %v125 = vld [vmem:[#allocation2 + $0x220] sm:$0xff]
    %v126 = vld [vmem:[#allocation2 + $0x228] sm:$0xff]
    %v127 = vld [vmem:[#allocation2 + $0x230] sm:$0xff]
    %v128 = vld [vmem:[#allocation2 + $0x238] sm:$0xff]
    %v129 = vld [vmem:[#allocation2 + $0x240] sm:$0xff]
    %v130 = vld [vmem:[#allocation2 + $0x248] sm:$0xff]
    %v131 = vld [vmem:[#allocation2 + $0x250] sm:$0xff]
    %v132 = vld [vmem:[#allocation2 + $0x258] sm:$0xff]
    %v133 = vld [vmem:[#allocation2 + $0x260] sm:$0xff]
    %v134 = vld [vmem:[#allocation2 + $0x268] sm:$0xff]
    %v135 = vld [vmem:[#allocation2 + $0x270] sm:$0xff]
    %v136 = vld [vmem:[#allocation2 + $0x278] sm:$0xff]
    %v137 = vld [vmem:[#allocation2 + $0x280] sm:$0xff]
    %v138 = vld [vmem:[#allocation2 + $0x288] sm:$0xff]
    %v139 = vld [vmem:[#allocation2 + $0x290] sm:$0xff]
    %v140 = vld [vmem:[#allocation2 + $0x298] sm:$0xff]
    %v141 = vld [vmem:[#allocation2 + $0x2a0] sm:$0xff]
    %v142 = vld [vmem:[#allocation2 + $0x2a8] sm:$0xff]
    %v143 = vld [vmem:[#allocation2 + $0x2b0] sm:$0xff]
    %v144 = vld [vmem:[#allocation2 + $0x2b8] sm:$0xff]
    %v145 = vld [vmem:[#allocation2 + $0x2c0] sm:$0xff]
    %v146 = vld [vmem:[#allocation2 + $0x2c8] sm:$0xff]
    %v147 = vld [vmem:[#allocation2 + $0x2d0] sm:$0xff]
    %v148 = vld [vmem:[#allocation2 + $0x2d8] sm:$0xff]
    %v149 = vld [vmem:[#allocation2 + $0x2e0] sm:$0xff]
    %v150 = vld [vmem:[#allocation2 + $0x2e8] sm:$0xff]
    %v151 = vld [vmem:[#allocation2 + $0x2f0] sm:$0xff]
    %v152 = vld [vmem:[#allocation2 + $0x2f8] sm:$0xff]
    %v153 = vld [vmem:[#allocation2 + $0x300] sm:$0xff]
    %v154 = vld [vmem:[#allocation2 + $0x308] sm:$0xff]
    %v155 = vld [vmem:[#allocation2 + $0x310] sm:$0xff]
    %v156 = vld [vmem:[#allocation2 + $0x318] sm:$0xff]
    %v157 = vld [vmem:[#allocation2 + $0x320] sm:$0xff]
    %v158 = vld [vmem:[#allocation2 + $0x328] sm:$0xff]
    %v159 = vld [vmem:[#allocation2 + $0x330] sm:$0xff]
    %v160 = vld [vmem:[#allocation2 + $0x338] sm:$0xff]
    %v161 = vld [vmem:[#allocation2 + $0x340] sm:$0xff]
    %v162 = vld [vmem:[#allocation2 + $0x348] sm:$0xff]
    %v163 = vld [vmem:[#allocation2 + $0x350] sm:$0xff]
    %v164 = vld [vmem:[#allocation2 + $0x358] sm:$0xff]
    %v165 = vld [vmem:[#allocation2 + $0x360] sm:$0xff]
    %v166 = vld [vmem:[#allocation2 + $0x368] sm:$0xff]
    %v167 = vld [vmem:[#allocation2 + $0x370] sm:$0xff]
    %v168 = vld [vmem:[#allocation2 + $0x378] sm:$0xff]
    %v169 = vld [vmem:[#allocation2 + $0x380] sm:$0xff]
    %v170 = vld [vmem:[#allocation2 + $0x388] sm:$0xff]
    %v171 = vld [vmem:[#allocation2 + $0x390] sm:$0xff]
    %v172 = vld [vmem:[#allocation2 + $0x398] sm:$0xff]
    %v173 = vld [vmem:[#allocation2 + $0x3a0] sm:$0xff]
    %v174 = vld [vmem:[#allocation2 + $0x3a8] sm:$0xff]
    %v175 = vld [vmem:[#allocation2 + $0x3b0] sm:$0xff]
    %v176 = vld [vmem:[#allocation2 + $0x3b8] sm:$0xff]
    %v177 = vld [vmem:[#allocation2 + $0x3c0] sm:$0xff]
    %v178 = vld [vmem:[#allocation2 + $0x3c8] sm:$0xff]
    %v179 = vld [vmem:[#allocation2 + $0x3d0] sm:$0xff]
    %v180 = vld [vmem:[#allocation2 + $0x3d8] sm:$0xff]
    %v181 = vld [vmem:[#allocation2 + $0x3e0] sm:$0xff]
    %v182 = vld [vmem:[#allocation2 + $0x3e8] sm:$0xff]
    %v183 = vld [vmem:[#allocation2 + $0x3f0] sm:$0xff]
    %v184 = vld [vmem:[#allocation2 + $0x3f8] sm:$0xff]
    %v185 = vld [vmem:[#allocation2 + $0x400] sm:$0xff]
    %v186 = vld [vmem:[#allocation2 + $0x408] sm:$0xff]
    %v187 = vld [vmem:[#allocation2 + $0x410] sm:$0xff]
    %v188 = vld [vmem:[#allocation2 + $0x418] sm:$0xff]
    %v189 = vld [vmem:[#allocation2 + $0x420] sm:$0xff]
    %v190 = vld [vmem:[#allocation2 + $0x428] sm:$0xff]
    %v191 = vld [vmem:[#allocation2 + $0x430] sm:$0xff]
    %v192 = vld [vmem:[#allocation2 + $0x438] sm:$0xff]
    %v193 = vld [vmem:[#allocation2 + $0x440] sm:$0xff]
    %v194 = vld [vmem:[#allocation2 + $0x448] sm:$0xff]
    %v195 = vld [vmem:[#allocation2 + $0x450] sm:$0xff]
    %v196 = vld [vmem:[#allocation2 + $0x458] sm:$0xff]
    %v197 = vld [vmem:[#allocation2 + $0x460] sm:$0xff]
    %v198 = vld [vmem:[#allocation2 + $0x468] sm:$0xff]
    %v199 = vld [vmem:[#allocation2 + $0x470] sm:$0xff]
    %v200 = vld [vmem:[#allocation2 + $0x478] sm:$0xff]
    %v201 = vld [vmem:[#allocation2 + $0x480] sm:$0xff]
    %v202 = vld [vmem:[#allocation2 + $0x488] sm:$0xff]
    %v203 = vld [vmem:[#allocation2 + $0x490] sm:$0xff]
    %v204 = vld [vmem:[#allocation2 + $0x498] sm:$0xff]
    %v205 = vld [vmem:[#allocation2 + $0x4a0] sm:$0xff]
    %v206 = vld [vmem:[#allocation2 + $0x4a8] sm:$0xff]
    %v207 = vld [vmem:[#allocation2 + $0x4b0] sm:$0xff]
    %v208 = vld [vmem:[#allocation2 + $0x4b8] sm:$0xff]
    %v209 = vld [vmem:[#allocation2 + $0x4c0] sm:$0xff]
    %v210 = vld [vmem:[#allocation2 + $0x4c8] sm:$0xff]
    %v211 = vld [vmem:[#allocation2 + $0x4d0] sm:$0xff]
    %v212 = vld [vmem:[#allocation2 + $0x4d8] sm:$0xff]
    %v213 = vld [vmem:[#allocation2 + $0x4e0] sm:$0xff]
    %v214 = vld [vmem:[#allocation2 + $0x4e8] sm:$0xff]
    %v215 = vld [vmem:[#allocation2 + $0x4f0] sm:$0xff]
    %v216 = vld [vmem:[#allocation2 + $0x4f8] sm:$0xff]
    %v217 = vld [vmem:[#allocation2 + $0x500] sm:$0xff]
    %v218 = vld [vmem:[#allocation2 + $0x508] sm:$0xff]
    %v219 = vld [vmem:[#allocation2 + $0x510] sm:$0xff]
    %v220 = vld [vmem:[#allocation2 + $0x518] sm:$0xff]
    %v221 = vld [vmem:[#allocation2 + $0x520] sm:$0xff]
    %v222 = vld [vmem:[#allocation2 + $0x528] sm:$0xff]
    %v223 = vld [vmem:[#allocation2 + $0x530] sm:$0xff]
    %v224 = vld [vmem:[#allocation2 + $0x538] sm:$0xff]
    %v225 = vld [vmem:[#allocation2 + $0x540] sm:$0xff]
    %v226 = vld [vmem:[#allocation2 + $0x548] sm:$0xff]
    %v227 = vld [vmem:[#allocation2 + $0x550] sm:$0xff]
    %v228 = vld [vmem:[#allocation2 + $0x558] sm:$0xff]
    %v229 = vld [vmem:[#allocation2 + $0x560] sm:$0xff]
    %v230 = vld [vmem:[#allocation2 + $0x568] sm:$0xff]
    %v231 = vld [vmem:[#allocation2 + $0x570] sm:$0xff]
    %v232 = vld [vmem:[#allocation2 + $0x578] sm:$0xff]
    %v233 = vld [vmem:[#allocation2 + $0x580] sm:$0xff]
    %v234 = vld [vmem:[#allocation2 + $0x588] sm:$0xff]
    %v235 = vld [vmem:[#allocation2 + $0x590] sm:$0xff]
    %v236 = vld [vmem:[#allocation2 + $0x598] sm:$0xff]
    %v237 = vld [vmem:[#allocation2 + $0x5a0] sm:$0xff]
    %v238 = vld [vmem:[#allocation2 + $0x5a8] sm:$0xff]
    %v239 = vld [vmem:[#allocation2 + $0x5b0] sm:$0xff]
    %v240 = vld [vmem:[#allocation2 + $0x5b8] sm:$0xff]
    %v241 = vld [vmem:[#allocation2 + $0x5c0] sm:$0xff]
    %v242 = vld [vmem:[#allocation2 + $0x5c8] sm:$0xff]
    %v243 = vld [vmem:[#allocation2 + $0x5d0] sm:$0xff]
    %v244 = vld [vmem:[#allocation2 + $0x5d8] sm:$0xff]
    %v245 = vld [vmem:[#allocation2 + $0x5e0] sm:$0xff]
    %v246 = vld [vmem:[#allocation2 + $0x5e8] sm:$0xff]
    %v247 = vld [vmem:[#allocation2 + $0x5f0] sm:$0xff]
    %v248 = vld [vmem:[#allocation2 + $0x5f8] sm:$0xff]
    %v249 = vld [vmem:[#allocation2 + $0x600] sm:$0xff]
    %v250 = vld [vmem:[#allocation2 + $0x608] sm:$0xff]
    %v251 = vld [vmem:[#allocation2 + $0x610] sm:$0xff]
    %v252 = vld [vmem:[#allocation2 + $0x618] sm:$0xff]
    %v253 = vld [vmem:[#allocation2 + $0x620] sm:$0xff]
    %v254 = vld [vmem:[#allocation2 + $0x628] sm:$0xff]
    %v255 = vld [vmem:[#allocation2 + $0x630] sm:$0xff]
    %v256 = vld [vmem:[#allocation2 + $0x638] sm:$0xff]
    %v257 = vld [vmem:[%s2] sm:$0xff]
    %v259 = vlaneseq
    %v260 = vshrl.u32 %v259, 7
    %v261 = vsub.s32 0, %v260
    %v262 = vrot.slane %v257, %v261
    %v263 = vlaneseq
    %v264 = vshrl.u32 %v263, 7
    %v265 = vsub.s32 1, %v264
    %v266 = vrot.slane %v257, %v265
    %v267 = vlaneseq
    %v268 = vshrl.u32 %v267, 7
    %v269 = vsub.s32 2, %v268
    %v270 = vrot.slane %v257, %v269
    %v271 = vlaneseq
    %v272 = vshrl.u32 %v271, 7
    %v273 = vsub.s32 3, %v272
    %v274 = vrot.slane %v257, %v273
    %v275 = vlaneseq
    %v276 = vshrl.u32 %v275, 7
    %v277 = vsub.s32 4, %v276
    %v278 = vrot.slane %v257, %v277
    %v279 = vlaneseq
    %v280 = vshrl.u32 %v279, 7
    %v281 = vsub.s32 5, %v280
    %v282 = vrot.slane %v257, %v281
    %v283 = vlaneseq
    %v284 = vshrl.u32 %v283, 7
    %v285 = vsub.s32 6, %v284
    %v286 = vrot.slane %v257, %v285
    %v287 = vlaneseq
    %v288 = vshrl.u32 %v287, 7
    %v289 = vsub.s32 7, %v288
    %v290 = vrot.slane %v257, %v289
    %v301 = vunpack.c.l.b16 %v55
    %v302 = vunpack.c.h.b16 %v55
    %v303 = vunpack.c.l.b16 %v56
    %v304 = vunpack.c.h.b16 %v56
    %v305 = vpack.c.b16 %v301, %v301
    %v306 = vpack.c.b16 %v302, %v302
    %v307 = vpack.c.b16 %v303, %v303
    %v308 = vpack.c.b16 %v304, %v304
    %v512 = vunpack.c.l.b16 %v57
    %v513 = vunpack.c.h.b16 %v57
    %v514 = vunpack.c.l.b16 %v58
    %v515 = vunpack.c.h.b16 %v58
    %v516 = vunpack.c.l.b16 %v59
    %v517 = vunpack.c.h.b16 %v59
    %v518 = vunpack.c.l.b16 %v60
    %v519 = vunpack.c.h.b16 %v60
    %v520 = vunpack.c.l.b16 %v61
    %v521 = vunpack.c.h.b16 %v61
    %v522 = vunpack.c.l.b16 %v62
    %v523 = vunpack.c.h.b16 %v62
    %v524 = vunpack.c.l.b16 %v63
    %v525 = vunpack.c.h.b16 %v63
    %v526 = vunpack.c.l.b16 %v64
    %v527 = vunpack.c.h.b16 %v64
    %v528 = vunpack.c.l.b16 %v65
    %v529 = vunpack.c.h.b16 %v65
    %v530 = vunpack.c.l.b16 %v66
    %v531 = vunpack.c.h.b16 %v66
    %v532 = vunpack.c.l.b16 %v67
    %v533 = vunpack.c.h.b16 %v67
    %v534 = vunpack.c.l.b16 %v68
    %v535 = vunpack.c.h.b16 %v68
    %v536 = vunpack.c.l.b16 %v69
    %v537 = vunpack.c.h.b16 %v69
    %v538 = vunpack.c.l.b16 %v70
    %v539 = vunpack.c.h.b16 %v70
    %v540 = vunpack.c.l.b16 %v71
    %v541 = vunpack.c.h.b16 %v71
    %v542 = vunpack.c.l.b16 %v72
    %v543 = vunpack.c.h.b16 %v72
    %v544 = vunpack.c.l.b16 %v73
    %v545 = vunpack.c.h.b16 %v73
    %v546 = vunpack.c.l.b16 %v74
    %v547 = vunpack.c.h.b16 %v74
    %v548 = vunpack.c.l.b16 %v75
    %v549 = vunpack.c.h.b16 %v75
    %v550 = vunpack.c.l.b16 %v76
    %v551 = vunpack.c.h.b16 %v76
    %v552 = vunpack.c.l.b16 %v77
    %v553 = vunpack.c.h.b16 %v77
    %v554 = vunpack.c.l.b16 %v78
    %v555 = vunpack.c.h.b16 %v78
    %v556 = vunpack.c.l.b16 %v79
    %v557 = vunpack.c.h.b16 %v79
    %v558 = vunpack.c.l.b16 %v80
    %v559 = vunpack.c.h.b16 %v80
    %v560 = vunpack.c.l.b16 %v81
    %v561 = vunpack.c.h.b16 %v81
    %v562 = vunpack.c.l.b16 %v82
    %v563 = vunpack.c.h.b16 %v82
    %v564 = vunpack.c.l.b16 %v83
    %v565 = vunpack.c.h.b16 %v83
    %v566 = vunpack.c.l.b16 %v84
    %v567 = vunpack.c.h.b16 %v84
    %v568 = vunpack.c.l.b16 %v85
    %v569 = vunpack.c.h.b16 %v85
    %v570 = vunpack.c.l.b16 %v86
    %v571 = vunpack.c.h.b16 %v86
    %v572 = vunpack.c.l.b16 %v87
    %v573 = vunpack.c.h.b16 %v87
    %v574 = vunpack.c.l.b16 %v88
    %v575 = vunpack.c.h.b16 %v88
    %v576 = vunpack.c.l.b16 %v89
    %v577 = vunpack.c.h.b16 %v89
    %v578 = vunpack.c.l.b16 %v90
    %v579 = vunpack.c.h.b16 %v90
    %v580 = vunpack.c.l.b16 %v91
    %v581 = vunpack.c.h.b16 %v91
    %v582 = vunpack.c.l.b16 %v92
    %v583 = vunpack.c.h.b16 %v92
    %v584 = vunpack.c.l.b16 %v93
    %v585 = vunpack.c.h.b16 %v93
    %v586 = vunpack.c.l.b16 %v94
    %v587 = vunpack.c.h.b16 %v94
    %v588 = vunpack.c.l.b16 %v95
    %v589 = vunpack.c.h.b16 %v95
    %v590 = vunpack.c.l.b16 %v96
    %v591 = vunpack.c.h.b16 %v96
    %v592 = vunpack.c.l.b16 %v97
    %v593 = vunpack.c.h.b16 %v97
    %v594 = vunpack.c.l.b16 %v98
    %v595 = vunpack.c.h.b16 %v98
    %v596 = vunpack.c.l.b16 %v99
    %v597 = vunpack.c.h.b16 %v99
    %v598 = vunpack.c.l.b16 %v100
    %v599 = vunpack.c.h.b16 %v100
    %v600 = vunpack.c.l.b16 %v101
    %v601 = vunpack.c.h.b16 %v101
    %v602 = vunpack.c.l.b16 %v102
    %v603 = vunpack.c.h.b16 %v102
    %v604 = vunpack.c.l.b16 %v103
    %v605 = vunpack.c.h.b16 %v103
    %v606 = vunpack.c.l.b16 %v104
    %v607 = vunpack.c.h.b16 %v104
    %v608 = vunpack.c.l.b16 %v105
    %v609 = vunpack.c.h.b16 %v105
    %v610 = vunpack.c.l.b16 %v106
    %v611 = vunpack.c.h.b16 %v106
    %v612 = vunpack.c.l.b16 %v107
    %v613 = vunpack.c.h.b16 %v107
    %v614 = vunpack.c.l.b16 %v108
    %v615 = vunpack.c.h.b16 %v108
    %v616 = vunpack.c.l.b16 %v109
    %v617 = vunpack.c.h.b16 %v109
    %v618 = vunpack.c.l.b16 %v110
    %v619 = vunpack.c.h.b16 %v110
    %v620 = vunpack.c.l.b16 %v111
    %v621 = vunpack.c.h.b16 %v111
    %v622 = vunpack.c.l.b16 %v112
    %v623 = vunpack.c.h.b16 %v112
    %v624 = vunpack.c.l.b16 %v113
    %v625 = vunpack.c.h.b16 %v113
    %v626 = vunpack.c.l.b16 %v114
    %v627 = vunpack.c.h.b16 %v114
    %v628 = vunpack.c.l.b16 %v115
    %v629 = vunpack.c.h.b16 %v115
    %v630 = vunpack.c.l.b16 %v116
    %v631 = vunpack.c.h.b16 %v116
    %v632 = vunpack.c.l.b16 %v117
    %v633 = vunpack.c.h.b16 %v117
    %v634 = vunpack.c.l.b16 %v118
    %v635 = vunpack.c.h.b16 %v118
    %v636 = vunpack.c.l.b16 %v119
    %v637 = vunpack.c.h.b16 %v119
    %v638 = vunpack.c.l.b16 %v120
    %v639 = vunpack.c.h.b16 %v120
    %v640 = vunpack.c.l.b16 %v121
    %v641 = vunpack.c.h.b16 %v121
    %v642 = vunpack.c.l.b16 %v122
    %v643 = vunpack.c.h.b16 %v122
    %v644 = vunpack.c.l.b16 %v123
    %v645 = vunpack.c.h.b16 %v123
    %v646 = vunpack.c.l.b16 %v124
    %v647 = vunpack.c.h.b16 %v124
    %v648 = vunpack.c.l.b16 %v125
    %v649 = vunpack.c.h.b16 %v125
    %v650 = vunpack.c.l.b16 %v126
    %v651 = vunpack.c.h.b16 %v126
    %v652 = vunpack.c.l.b16 %v127
    %v653 = vunpack.c.h.b16 %v127
    %v654 = vunpack.c.l.b16 %v128
    %v655 = vunpack.c.h.b16 %v128
    %v656 = vunpack.c.l.b16 %v129
    %v657 = vunpack.c.h.b16 %v129
    %v658 = vunpack.c.l.b16 %v130
    %v659 = vunpack.c.h.b16 %v130
    %v660 = vunpack.c.l.b16 %v131
    %v661 = vunpack.c.h.b16 %v131
    %v662 = vunpack.c.l.b16 %v132
    %v663 = vunpack.c.h.b16 %v132
    %v664 = vunpack.c.l.b16 %v133
    %v665 = vunpack.c.h.b16 %v133
    %v666 = vunpack.c.l.b16 %v134
    %v667 = vunpack.c.h.b16 %v134
    %v668 = vunpack.c.l.b16 %v135
    %v669 = vunpack.c.h.b16 %v135
    %v670 = vunpack.c.l.b16 %v136
    %v671 = vunpack.c.h.b16 %v136
    %v672 = vunpack.c.l.b16 %v137
    %v673 = vunpack.c.h.b16 %v137
    %v674 = vunpack.c.l.b16 %v138
    %v675 = vunpack.c.h.b16 %v138
    %v676 = vunpack.c.l.b16 %v139
    %v677 = vunpack.c.h.b16 %v139
    %v678 = vunpack.c.l.b16 %v140
    %v679 = vunpack.c.h.b16 %v140
    %v680 = vunpack.c.l.b16 %v141
    %v681 = vunpack.c.h.b16 %v141
    %v682 = vunpack.c.l.b16 %v142
    %v683 = vunpack.c.h.b16 %v142
    %v684 = vunpack.c.l.b16 %v143
    %v685 = vunpack.c.h.b16 %v143
    %v686 = vunpack.c.l.b16 %v144
    %v687 = vunpack.c.h.b16 %v144
    %v688 = vunpack.c.l.b16 %v145
    %v689 = vunpack.c.h.b16 %v145
    %v690 = vunpack.c.l.b16 %v146
    %v691 = vunpack.c.h.b16 %v146
    %v692 = vunpack.c.l.b16 %v147
    %v693 = vunpack.c.h.b16 %v147
    %v694 = vunpack.c.l.b16 %v148
    %v695 = vunpack.c.h.b16 %v148
    %v696 = vunpack.c.l.b16 %v149
    %v697 = vunpack.c.h.b16 %v149
    %v698 = vunpack.c.l.b16 %v150
    %v699 = vunpack.c.h.b16 %v150
    %v700 = vunpack.c.l.b16 %v151
    %v701 = vunpack.c.h.b16 %v151
    %v702 = vunpack.c.l.b16 %v152
    %v703 = vunpack.c.h.b16 %v152
    %v704 = vunpack.c.l.b16 %v153
    %v705 = vunpack.c.h.b16 %v153
    %v706 = vunpack.c.l.b16 %v154
    %v707 = vunpack.c.h.b16 %v154
    %v708 = vunpack.c.l.b16 %v155
    %v709 = vunpack.c.h.b16 %v155
    %v710 = vunpack.c.l.b16 %v156
    %v711 = vunpack.c.h.b16 %v156
    %v712 = vunpack.c.l.b16 %v157
    %v713 = vunpack.c.h.b16 %v157
    %v714 = vunpack.c.l.b16 %v158
    %v715 = vunpack.c.h.b16 %v158
    %v716 = vunpack.c.l.b16 %v159
    %v717 = vunpack.c.h.b16 %v159
    %v718 = vunpack.c.l.b16 %v160
    %v719 = vunpack.c.h.b16 %v160
    %v720 = vunpack.c.l.b16 %v161
    %v721 = vunpack.c.h.b16 %v161
    %v722 = vunpack.c.l.b16 %v162
    %v723 = vunpack.c.h.b16 %v162
    %v724 = vunpack.c.l.b16 %v163
    %v725 = vunpack.c.h.b16 %v163
    %v726 = vunpack.c.l.b16 %v164
    %v727 = vunpack.c.h.b16 %v164
    %v728 = vunpack.c.l.b16 %v165
    %v729 = vunpack.c.h.b16 %v165
    %v730 = vunpack.c.l.b16 %v166
    %v731 = vunpack.c.h.b16 %v166
    %v732 = vunpack.c.l.b16 %v167
    %v733 = vunpack.c.h.b16 %v167
    %v734 = vunpack.c.l.b16 %v168
    %v735 = vunpack.c.h.b16 %v168
    %v736 = vunpack.c.l.b16 %v169
    %v737 = vunpack.c.h.b16 %v169
    %v738 = vunpack.c.l.b16 %v170
    %v739 = vunpack.c.h.b16 %v170
    %v740 = vunpack.c.l.b16 %v171
    %v741 = vunpack.c.h.b16 %v171
    %v742 = vunpack.c.l.b16 %v172
    %v743 = vunpack.c.h.b16 %v172
    %v744 = vunpack.c.l.b16 %v173
    %v745 = vunpack.c.h.b16 %v173
    %v746 = vunpack.c.l.b16 %v174
    %v747 = vunpack.c.h.b16 %v174
    %v748 = vunpack.c.l.b16 %v175
    %v749 = vunpack.c.h.b16 %v175
    %v750 = vunpack.c.l.b16 %v176
    %v751 = vunpack.c.h.b16 %v176
    %v752 = vunpack.c.l.b16 %v177
    %v753 = vunpack.c.h.b16 %v177
    %v754 = vunpack.c.l.b16 %v178
    %v755 = vunpack.c.h.b16 %v178
    %v756 = vunpack.c.l.b16 %v179
    %v757 = vunpack.c.h.b16 %v179
    %v758 = vunpack.c.l.b16 %v180
    %v759 = vunpack.c.h.b16 %v180
    %v760 = vunpack.c.l.b16 %v181
    %v761 = vunpack.c.h.b16 %v181
    %v762 = vunpack.c.l.b16 %v182
    %v763 = vunpack.c.h.b16 %v182
    %v764 = vunpack.c.l.b16 %v183
    %v765 = vunpack.c.h.b16 %v183
    %v766 = vunpack.c.l.b16 %v184
    %v767 = vunpack.c.h.b16 %v184
    %v768 = vunpack.c.l.b16 %v185
    %v769 = vunpack.c.h.b16 %v185
    %v770 = vunpack.c.l.b16 %v186
    %v771 = vunpack.c.h.b16 %v186
    %v772 = vunpack.c.l.b16 %v187
    %v773 = vunpack.c.h.b16 %v187
    %v774 = vunpack.c.l.b16 %v188
    %v775 = vunpack.c.h.b16 %v188
    %v776 = vunpack.c.l.b16 %v189
    %v777 = vunpack.c.h.b16 %v189
    %v778 = vunpack.c.l.b16 %v190
    %v779 = vunpack.c.h.b16 %v190
    %v780 = vunpack.c.l.b16 %v191
    %v781 = vunpack.c.h.b16 %v191
    %v782 = vunpack.c.l.b16 %v192
    %v783 = vunpack.c.h.b16 %v192
    %v784 = vunpack.c.l.b16 %v193
    %v785 = vunpack.c.h.b16 %v193
    %v786 = vunpack.c.l.b16 %v194
    %v787 = vunpack.c.h.b16 %v194
    %v788 = vunpack.c.l.b16 %v195
    %v789 = vunpack.c.h.b16 %v195
    %v790 = vunpack.c.l.b16 %v196
    %v791 = vunpack.c.h.b16 %v196
    %v792 = vunpack.c.l.b16 %v197
    %v793 = vunpack.c.h.b16 %v197
    %v794 = vunpack.c.l.b16 %v198
    %v795 = vunpack.c.h.b16 %v198
    %v796 = vunpack.c.l.b16 %v199
    %v797 = vunpack.c.h.b16 %v199
    %v798 = vunpack.c.l.b16 %v200
    %v799 = vunpack.c.h.b16 %v200
    %v800 = vunpack.c.l.b16 %v201
    %v801 = vunpack.c.h.b16 %v201
    %v802 = vunpack.c.l.b16 %v202
    %v803 = vunpack.c.h.b16 %v202
    %v804 = vunpack.c.l.b16 %v203
    %v805 = vunpack.c.h.b16 %v203
    %v806 = vunpack.c.l.b16 %v204
    %v807 = vunpack.c.h.b16 %v204
    %v808 = vunpack.c.l.b16 %v205
    %v809 = vunpack.c.h.b16 %v205
    %v810 = vunpack.c.l.b16 %v206
    %v811 = vunpack.c.h.b16 %v206
    %v812 = vunpack.c.l.b16 %v207
    %v813 = vunpack.c.h.b16 %v207
    %v814 = vunpack.c.l.b16 %v208
    %v815 = vunpack.c.h.b16 %v208
    %v816 = vunpack.c.l.b16 %v209
    %v817 = vunpack.c.h.b16 %v209
    %v818 = vunpack.c.l.b16 %v210
    %v819 = vunpack.c.h.b16 %v210
    %v820 = vunpack.c.l.b16 %v211
    %v821 = vunpack.c.h.b16 %v211
    %v822 = vunpack.c.l.b16 %v212
    %v823 = vunpack.c.h.b16 %v212
    %v824 = vunpack.c.l.b16 %v213
    %v825 = vunpack.c.h.b16 %v213
    %v826 = vunpack.c.l.b16 %v214
    %v827 = vunpack.c.h.b16 %v214
    %v828 = vunpack.c.l.b16 %v215
    %v829 = vunpack.c.h.b16 %v215
    %v830 = vunpack.c.l.b16 %v216
    %v831 = vunpack.c.h.b16 %v216
    %v832 = vunpack.c.l.b16 %v217
    %v833 = vunpack.c.h.b16 %v217
    %v834 = vunpack.c.l.b16 %v218
    %v835 = vunpack.c.h.b16 %v218
    %v836 = vunpack.c.l.b16 %v219
    %v837 = vunpack.c.h.b16 %v219
    %v838 = vunpack.c.l.b16 %v220
    %v839 = vunpack.c.h.b16 %v220
    %v840 = vunpack.c.l.b16 %v221
    %v841 = vunpack.c.h.b16 %v221
    %v842 = vunpack.c.l.b16 %v222
    %v843 = vunpack.c.h.b16 %v222
    %v844 = vunpack.c.l.b16 %v223
    %v845 = vunpack.c.h.b16 %v223
    %v846 = vunpack.c.l.b16 %v224
    %v847 = vunpack.c.h.b16 %v224
    %v848 = vunpack.c.l.b16 %v225
    %v849 = vunpack.c.h.b16 %v225
    %v850 = vunpack.c.l.b16 %v226
    %v851 = vunpack.c.h.b16 %v226
    %v852 = vunpack.c.l.b16 %v227
    %v853 = vunpack.c.h.b16 %v227
    %v854 = vunpack.c.l.b16 %v228
    %v855 = vunpack.c.h.b16 %v228
    %v856 = vunpack.c.l.b16 %v229
    %v857 = vunpack.c.h.b16 %v229
    %v858 = vunpack.c.l.b16 %v230
    %v859 = vunpack.c.h.b16 %v230
    %v860 = vunpack.c.l.b16 %v231
    %v861 = vunpack.c.h.b16 %v231
    %v862 = vunpack.c.l.b16 %v232
    %v863 = vunpack.c.h.b16 %v232
    %v864 = vunpack.c.l.b16 %v233
    %v865 = vunpack.c.h.b16 %v233
    %v866 = vunpack.c.l.b16 %v234
    %v867 = vunpack.c.h.b16 %v234
    %v868 = vunpack.c.l.b16 %v235
    %v869 = vunpack.c.h.b16 %v235
    %v870 = vunpack.c.l.b16 %v236
    %v871 = vunpack.c.h.b16 %v236
    %v872 = vunpack.c.l.b16 %v237
    %v873 = vunpack.c.h.b16 %v237
    %v874 = vunpack.c.l.b16 %v238
    %v875 = vunpack.c.h.b16 %v238
    %v876 = vunpack.c.l.b16 %v239
    %v877 = vunpack.c.h.b16 %v239
    %v878 = vunpack.c.l.b16 %v240
    %v879 = vunpack.c.h.b16 %v240
    %v880 = vunpack.c.l.b16 %v241
    %v881 = vunpack.c.h.b16 %v241
    %v882 = vunpack.c.l.b16 %v242
    %v883 = vunpack.c.h.b16 %v242
    %v884 = vunpack.c.l.b16 %v243
    %v885 = vunpack.c.h.b16 %v243
    %v886 = vunpack.c.l.b16 %v244
    %v887 = vunpack.c.h.b16 %v244
    %v888 = vunpack.c.l.b16 %v245
    %v889 = vunpack.c.h.b16 %v245
    %v890 = vunpack.c.l.b16 %v246
    %v891 = vunpack.c.h.b16 %v246
    %v892 = vunpack.c.l.b16 %v247
    %v893 = vunpack.c.h.b16 %v247
    %v894 = vunpack.c.l.b16 %v248
    %v895 = vunpack.c.h.b16 %v248
    %v896 = vunpack.c.l.b16 %v249
    %v897 = vunpack.c.h.b16 %v249
    %v898 = vunpack.c.l.b16 %v250
    %v899 = vunpack.c.h.b16 %v250
    %v900 = vunpack.c.l.b16 %v251
    %v901 = vunpack.c.h.b16 %v251
    %v902 = vunpack.c.l.b16 %v252
    %v903 = vunpack.c.h.b16 %v252
    %v904 = vunpack.c.l.b16 %v253
    %v905 = vunpack.c.h.b16 %v253
    %v906 = vunpack.c.l.b16 %v254
    %v907 = vunpack.c.h.b16 %v254
    %v908 = vunpack.c.l.b16 %v255
    %v909 = vunpack.c.h.b16 %v255
    %v910 = vunpack.c.l.b16 %v256
    %v911 = vunpack.c.h.b16 %v256
    %v912 = vpack.c.b16 %v520, %v512
    %v913 = vpack.c.b16 %v521, %v513
    %v914 = vpack.c.b16 %v522, %v514
    %v915 = vpack.c.b16 %v523, %v515
    %v916 = vpack.c.b16 %v524, %v516
    %v917 = vpack.c.b16 %v525, %v517
    %v918 = vpack.c.b16 %v526, %v518
    %v919 = vpack.c.b16 %v527, %v519
    %v920 = vpack.c.b16 %v536, %v528
    %v921 = vpack.c.b16 %v537, %v529
    %v922 = vpack.c.b16 %v538, %v530
    %v923 = vpack.c.b16 %v539, %v531
    %v924 = vpack.c.b16 %v540, %v532
    %v925 = vpack.c.b16 %v541, %v533
    %v926 = vpack.c.b16 %v542, %v534
    %v927 = vpack.c.b16 %v543, %v535
    %v928 = vpack.c.b16 %v552, %v544
    %v929 = vpack.c.b16 %v553, %v545
    %v930 = vpack.c.b16 %v554, %v546
    %v931 = vpack.c.b16 %v555, %v547
    %v932 = vpack.c.b16 %v556, %v548
    %v933 = vpack.c.b16 %v557, %v549
    %v934 = vpack.c.b16 %v558, %v550
    %v935 = vpack.c.b16 %v559, %v551
    %v936 = vpack.c.b16 %v568, %v560
    %v937 = vpack.c.b16 %v569, %v561
    %v938 = vpack.c.b16 %v570, %v562
    %v939 = vpack.c.b16 %v571, %v563
    %v940 = vpack.c.b16 %v572, %v564
    %v941 = vpack.c.b16 %v573, %v565
    %v942 = vpack.c.b16 %v574, %v566
    %v943 = vpack.c.b16 %v575, %v567
    %v944 = vpack.c.b16 %v584, %v576
    %v945 = vpack.c.b16 %v585, %v577
    %v946 = vpack.c.b16 %v586, %v578
    %v947 = vpack.c.b16 %v587, %v579
    %v948 = vpack.c.b16 %v588, %v580
    %v949 = vpack.c.b16 %v589, %v581
    %v950 = vpack.c.b16 %v590, %v582
    %v951 = vpack.c.b16 %v591, %v583
    %v952 = vpack.c.b16 %v600, %v592
    %v953 = vpack.c.b16 %v601, %v593
    %v954 = vpack.c.b16 %v602, %v594
    %v955 = vpack.c.b16 %v603, %v595
    %v956 = vpack.c.b16 %v604, %v596
    %v957 = vpack.c.b16 %v605, %v597
    %v958 = vpack.c.b16 %v606, %v598
    %v959 = vpack.c.b16 %v607, %v599
    %v960 = vpack.c.b16 %v616, %v608
    %v961 = vpack.c.b16 %v617, %v609
    %v962 = vpack.c.b16 %v618, %v610
    %v963 = vpack.c.b16 %v619, %v611
    %v964 = vpack.c.b16 %v620, %v612
    %v965 = vpack.c.b16 %v621, %v613
    %v966 = vpack.c.b16 %v622, %v614
    %v967 = vpack.c.b16 %v623, %v615
    %v968 = vpack.c.b16 %v632, %v624
    %v969 = vpack.c.b16 %v633, %v625
    %v970 = vpack.c.b16 %v634, %v626
    %v971 = vpack.c.b16 %v635, %v627
    %v972 = vpack.c.b16 %v636, %v628
    %v973 = vpack.c.b16 %v637, %v629
    %v974 = vpack.c.b16 %v638, %v630
    %v975 = vpack.c.b16 %v639, %v631
    %v976 = vpack.c.b16 %v648, %v640
    %v977 = vpack.c.b16 %v649, %v641
    %v978 = vpack.c.b16 %v650, %v642
    %v979 = vpack.c.b16 %v651, %v643
    %v980 = vpack.c.b16 %v652, %v644
    %v981 = vpack.c.b16 %v653, %v645
    %v982 = vpack.c.b16 %v654, %v646
    %v983 = vpack.c.b16 %v655, %v647
    %v984 = vpack.c.b16 %v664, %v656
    %v985 = vpack.c.b16 %v665, %v657
    %v986 = vpack.c.b16 %v666, %v658
    %v987 = vpack.c.b16 %v667, %v659
    %v988 = vpack.c.b16 %v668, %v660
    %v989 = vpack.c.b16 %v669, %v661
    %v990 = vpack.c.b16 %v670, %v662
    %v991 = vpack.c.b16 %v671, %v663
    %v992 = vpack.c.b16 %v680, %v672
    %v993 = vpack.c.b16 %v681, %v673
    %v994 = vpack.c.b16 %v682, %v674
    %v995 = vpack.c.b16 %v683, %v675
    %v996 = vpack.c.b16 %v684, %v676
    %v997 = vpack.c.b16 %v685, %v677
    %v998 = vpack.c.b16 %v686, %v678
    %v999 = vpack.c.b16 %v687, %v679
    %v1000 = vpack.c.b16 %v696, %v688
    %v1001 = vpack.c.b16 %v697, %v689
    %v1002 = vpack.c.b16 %v698, %v690
    %v1003 = vpack.c.b16 %v699, %v691
    %v1004 = vpack.c.b16 %v700, %v692
    %v1005 = vpack.c.b16 %v701, %v693
    %v1006 = vpack.c.b16 %v702, %v694
    %v1007 = vpack.c.b16 %v703, %v695
    %v1008 = vpack.c.b16 %v712, %v704
    %v1009 = vpack.c.b16 %v713, %v705
    %v1010 = vpack.c.b16 %v714, %v706
    %v1011 = vpack.c.b16 %v715, %v707
    %v1012 = vpack.c.b16 %v716, %v708
    %v1013 = vpack.c.b16 %v717, %v709
    %v1014 = vpack.c.b16 %v718, %v710
    %v1015 = vpack.c.b16 %v719, %v711
    %v1016 = vpack.c.b16 %v728, %v720
    %v1017 = vpack.c.b16 %v729, %v721
    %v1018 = vpack.c.b16 %v730, %v722
    %v1019 = vpack.c.b16 %v731, %v723
    %v1020 = vpack.c.b16 %v732, %v724
    %v1021 = vpack.c.b16 %v733, %v725
    %v1022 = vpack.c.b16 %v734, %v726
    %v1023 = vpack.c.b16 %v735, %v727
    %v1024 = vpack.c.b16 %v744, %v736
    %v1025 = vpack.c.b16 %v745, %v737
    %v1026 = vpack.c.b16 %v746, %v738
    %v1027 = vpack.c.b16 %v747, %v739
    %v1028 = vpack.c.b16 %v748, %v740
    %v1029 = vpack.c.b16 %v749, %v741
    %v1030 = vpack.c.b16 %v750, %v742
    %v1031 = vpack.c.b16 %v751, %v743
    %v1032 = vpack.c.b16 %v760, %v752
    %v1033 = vpack.c.b16 %v761, %v753
    %v1034 = vpack.c.b16 %v762, %v754
    %v1035 = vpack.c.b16 %v763, %v755
    %v1036 = vpack.c.b16 %v764, %v756
    %v1037 = vpack.c.b16 %v765, %v757
    %v1038 = vpack.c.b16 %v766, %v758
    %v1039 = vpack.c.b16 %v767, %v759
    %v1040 = vpack.c.b16 %v776, %v768
    %v1041 = vpack.c.b16 %v777, %v769
    %v1042 = vpack.c.b16 %v778, %v770
    %v1043 = vpack.c.b16 %v779, %v771
    %v1044 = vpack.c.b16 %v780, %v772
    %v1045 = vpack.c.b16 %v781, %v773
    %v1046 = vpack.c.b16 %v782, %v774
    %v1047 = vpack.c.b16 %v783, %v775
    %v1048 = vpack.c.b16 %v792, %v784
    %v1049 = vpack.c.b16 %v793, %v785
    %v1050 = vpack.c.b16 %v794, %v786
    %v1051 = vpack.c.b16 %v795, %v787
    %v1052 = vpack.c.b16 %v796, %v788
    %v1053 = vpack.c.b16 %v797, %v789
    %v1054 = vpack.c.b16 %v798, %v790
    %v1055 = vpack.c.b16 %v799, %v791
    %v1056 = vpack.c.b16 %v808, %v800
    %v1057 = vpack.c.b16 %v809, %v801
    %v1058 = vpack.c.b16 %v810, %v802
    %v1059 = vpack.c.b16 %v811, %v803
    %v1060 = vpack.c.b16 %v812, %v804
    %v1061 = vpack.c.b16 %v813, %v805
    %v1062 = vpack.c.b16 %v814, %v806
    %v1063 = vpack.c.b16 %v815, %v807
    %v1064 = vpack.c.b16 %v824, %v816
    %v1065 = vpack.c.b16 %v825, %v817
    %v1066 = vpack.c.b16 %v826, %v818
    %v1067 = vpack.c.b16 %v827, %v819
    %v1068 = vpack.c.b16 %v828, %v820
    %v1069 = vpack.c.b16 %v829, %v821
    %v1070 = vpack.c.b16 %v830, %v822
    %v1071 = vpack.c.b16 %v831, %v823
    %v1072 = vpack.c.b16 %v840, %v832
    %v1073 = vpack.c.b16 %v841, %v833
    %v1074 = vpack.c.b16 %v842, %v834
    %v1075 = vpack.c.b16 %v843, %v835
    %v1076 = vpack.c.b16 %v844, %v836
    %v1077 = vpack.c.b16 %v845, %v837
    %v1078 = vpack.c.b16 %v846, %v838
    %v1079 = vpack.c.b16 %v847, %v839
    %v1080 = vpack.c.b16 %v856, %v848
    %v1081 = vpack.c.b16 %v857, %v849
    %v1082 = vpack.c.b16 %v858, %v850
    %v1083 = vpack.c.b16 %v859, %v851
    %v1084 = vpack.c.b16 %v860, %v852
    %v1085 = vpack.c.b16 %v861, %v853
    %v1086 = vpack.c.b16 %v862, %v854
    %v1087 = vpack.c.b16 %v863, %v855
    %v1088 = vpack.c.b16 %v872, %v864
    %v1089 = vpack.c.b16 %v873, %v865
    %v1090 = vpack.c.b16 %v874, %v866
    %v1091 = vpack.c.b16 %v875, %v867
    %v1092 = vpack.c.b16 %v876, %v868
    %v1093 = vpack.c.b16 %v877, %v869
    %v1094 = vpack.c.b16 %v878, %v870
    %v1095 = vpack.c.b16 %v879, %v871
    %v1096 = vpack.c.b16 %v888, %v880
    %v1097 = vpack.c.b16 %v889, %v881
    %v1098 = vpack.c.b16 %v890, %v882
    %v1099 = vpack.c.b16 %v891, %v883
    %v1100 = vpack.c.b16 %v892, %v884
    %v1101 = vpack.c.b16 %v893, %v885
    %v1102 = vpack.c.b16 %v894, %v886
    %v1103 = vpack.c.b16 %v895, %v887
    %v1104 = vpack.c.b16 %v904, %v896
    %v1105 = vpack.c.b16 %v905, %v897
    %v1106 = vpack.c.b16 %v906, %v898
    %v1107 = vpack.c.b16 %v907, %v899
    %v1108 = vpack.c.b16 %v908, %v900
    %v1109 = vpack.c.b16 %v909, %v901
    %v1110 = vpack.c.b16 %v910, %v902
    %v1111 = vpack.c.b16 %v911, %v903
    %vm1312 = vcmask 130048
    %v1314 = vsel %vm1312, %v308, 0
    %1316 = vmatprep.subr.bf16.mxu0 %v913
    %1317 = vmatpush1.bf16.msra.mxu0 %v912
    %1318 = vmatprep.subr.bf16.mxu0 %v921
    %1319 = vmatpush1.bf16.msra.mxu0 %v920
    %1320 = vmatprep.subr.bf16.mxu0 %v929
    %1321 = vmatpush1.bf16.msra.mxu0 %v928
    %1322 = vmatprep.subr.bf16.mxu0 %v937
    %1323 = vmatpush1.bf16.msra.mxu0 %v936
    %1324 = vmatprep.subr.bf16.mxu0 %v945
    %1325 = vmatpush1.bf16.msra.mxu0 %v944
    %1326 = vmatprep.subr.bf16.mxu0 %v953
    %1327 = vmatpush1.bf16.msra.mxu0 %v952
    %1328 = vmatprep.subr.bf16.mxu0 %v961
    %1329 = vmatpush1.bf16.msra.mxu0 %v960
    %1330 = vmatprep.subr.bf16.mxu0 %v969
    %1331 = vmatpush1.bf16.msra.mxu0 %v968
    %1332 = vmatprep.subr.bf16.mxu0 %v977
    %1333 = vmatpush1.bf16.msra.mxu0 %v976
    %1334 = vmatprep.subr.bf16.mxu0 %v985
    %1335 = vmatpush1.bf16.msra.mxu0 %v984
    %1336 = vmatprep.subr.bf16.mxu0 %v993
    %1337 = vmatpush1.bf16.msra.mxu0 %v992
    %1338 = vmatprep.subr.bf16.mxu0 %v1001
    %1339 = vmatpush1.bf16.msra.mxu0 %v1000
    %1340 = vmatprep.subr.bf16.mxu0 %v1009
    %1341 = vmatpush1.bf16.msra.mxu0 %v1008
    %1342 = vmatprep.subr.bf16.mxu0 %v1017
    %1343 = vmatpush1.bf16.msra.mxu0 %v1016
    %1344 = vmatprep.subr.bf16.mxu0 %v1025
    %1345 = vmatpush1.bf16.msra.mxu0 %v1024
    %1346 = vmatprep.subr.bf16.mxu0 %v1033
    %1347 = vmatpush1.bf16.msra.mxu0 %v1032
    %1348 = vmatprep.mubr.bf16.mxu0 %v306
    %1349 = vmatmul.mubr.bf16.gmra.mrb[0].mxu0 %v305
    %v1350 = vpop.f32.mrb[0].mxu0
    %v1351 = vadd.f32 %v262, %v1350
    %v1352 = vpop.f32.mrb[0].mxu0
    %v1353 = vadd.f32 %v266, %v1352
    %v1354 = vpop.f32.mrb[0].mxu0
    %v1355 = vpop.f32.mrb[0].mxu0
    %1356 = vdwg.mxu0
    %1357 = vmatprep.subr.bf16.mxu0 %v1041
    %1358 = vmatpush1.bf16.msra.mxu0 %v1040
    %1359 = vmatprep.subr.bf16.mxu0 %v1049
    %1360 = vmatpush1.bf16.msra.mxu0 %v1048
    %1361 = vmatprep.subr.bf16.mxu0 %v1057
    %1362 = vmatpush1.bf16.msra.mxu0 %v1056
    %1363 = vmatprep.subr.bf16.mxu0 %v1065
    %1364 = vmatpush1.bf16.msra.mxu0 %v1064
    %1365 = vmatprep.subr.bf16.mxu0 %v1073
    %1366 = vmatpush1.bf16.msra.mxu0 %v1072
    %1367 = vmatprep.subr.bf16.mxu0 %v1081
    %1368 = vmatpush1.bf16.msra.mxu0 %v1080
    %1369 = vmatprep.subr.bf16.mxu0 %v1089
    %1370 = vmatpush1.bf16.msra.mxu0 %v1088
    %1371 = vmatprep.subr.bf16.mxu0 %v1097
    %1372 = vmatpush1.bf16.msra.mxu0 %v1096
    %1373 = vmatprep.subr.bf16.mxu0 %v1105
    %1374 = vmatpush1.bf16.msra.mxu0 %v1104
    %1375 = vmatprep.subr.bf16.mxu0 0
    %1376 = vmatpush1.bf16.msra.mxu0 0
    %1377 = vmatprep.subr.bf16.mxu0 0
    %1378 = vmatpush1.bf16.msra.mxu0 0
    %1379 = vmatprep.subr.bf16.mxu0 0
    %1380 = vmatpush1.bf16.msra.mxu0 0
    %1381 = vmatprep.subr.bf16.mxu0 0
    %1382 = vmatpush1.bf16.msra.mxu0 0
    %1383 = vmatprep.subr.bf16.mxu0 0
    %1384 = vmatpush1.bf16.msra.mxu0 0
    %1385 = vmatprep.subr.bf16.mxu0 0
    %1386 = vmatpush1.bf16.msra.mxu0 0
    %1387 = vmatprep.subr.bf16.mxu0 0
    %1388 = vmatpush1.bf16.msra.mxu0 0
    %1389 = vmatprep.mubr.bf16.mxu0 %v1314
    %1390 = vmatmul.mubr.bf16.gmra.mrb[0].mxu0 %v307
    %v1391 = vpop.f32.mrb[0].mxu0
    %v1392 = vadd.f32 %v1351, %v1391
    %v1393 = vpop.f32.mrb[0].mxu0
    %v1394 = vadd.f32 %v1353, %v1393
    %v1395 = vpop.f32.mrb[0].mxu0
    %v1396 = vpop.f32.mrb[0].mxu0
    %1397 = vdwg.mxu0
    %1398 = vmatprep.subr.bf16.mxu0 %v915
    %1399 = vmatpush1.bf16.msra.mxu0 %v914
    %1400 = vmatprep.subr.bf16.mxu0 %v923
    %1401 = vmatpush1.bf16.msra.mxu0 %v922
    %1402 = vmatprep.subr.bf16.mxu0 %v931
    %1403 = vmatpush1.bf16.msra.mxu0 %v930
    %1404 = vmatprep.subr.bf16.mxu0 %v939
    %1405 = vmatpush1.bf16.msra.mxu0 %v938
    %1406 = vmatprep.subr.bf16.mxu0 %v947
    %1407 = vmatpush1.bf16.msra.mxu0 %v946
    %1408 = vmatprep.subr.bf16.mxu0 %v955
    %1409 = vmatpush1.bf16.msra.mxu0 %v954
    %1410 = vmatprep.subr.bf16.mxu0 %v963
    %1411 = vmatpush1.bf16.msra.mxu0 %v962
    %1412 = vmatprep.subr.bf16.mxu0 %v971
    %1413 = vmatpush1.bf16.msra.mxu0 %v970
    %1414 = vmatprep.subr.bf16.mxu0 %v979
    %1415 = vmatpush1.bf16.msra.mxu0 %v978
    %1416 = vmatprep.subr.bf16.mxu0 %v987
    %1417 = vmatpush1.bf16.msra.mxu0 %v986
    %1418 = vmatprep.subr.bf16.mxu0 %v995
    %1419 = vmatpush1.bf16.msra.mxu0 %v994
    %1420 = vmatprep.subr.bf16.mxu0 %v1003
    %1421 = vmatpush1.bf16.msra.mxu0 %v1002
    %1422 = vmatprep.subr.bf16.mxu0 %v1011
    %1423 = vmatpush1.bf16.msra.mxu0 %v1010
    %1424 = vmatprep.subr.bf16.mxu0 %v1019
    %1425 = vmatpush1.bf16.msra.mxu0 %v1018
    %1426 = vmatprep.subr.bf16.mxu0 %v1027
    %1427 = vmatpush1.bf16.msra.mxu0 %v1026
    %1428 = vmatprep.subr.bf16.mxu0 %v1035
    %1429 = vmatpush1.bf16.msra.mxu0 %v1034
    %1430 = vmatprep.mubr.bf16.mxu0 %v306
    %1431 = vmatmul.mubr.bf16.gmra.mrb[0].mxu0 %v305
    %v1432 = vpop.f32.mrb[0].mxu0
    %v1433 = vadd.f32 %v270, %v1432
    %v1434 = vpop.f32.mrb[0].mxu0
    %v1435 = vadd.f32 %v274, %v1434
    %v1436 = vpop.f32.mrb[0].mxu0
    %v1437 = vpop.f32.mrb[0].mxu0
    %1438 = vdwg.mxu0
    %1439 = vmatprep.subr.bf16.mxu0 %v1043
    %1440 = vmatpush1.bf16.msra.mxu0 %v1042
    %1441 = vmatprep.subr.bf16.mxu0 %v1051
    %1442 = vmatpush1.bf16.msra.mxu0 %v1050
    %1443 = vmatprep.subr.bf16.mxu0 %v1059
    %1444 = vmatpush1.bf16.msra.mxu0 %v1058
    %1445 = vmatprep.subr.bf16.mxu0 %v1067
    %1446 = vmatpush1.bf16.msra.mxu0 %v1066
    %1447 = vmatprep.subr.bf16.mxu0 %v1075
    %1448 = vmatpush1.bf16.msra.mxu0 %v1074
    %1449 = vmatprep.subr.bf16.mxu0 %v1083
    %1450 = vmatpush1.bf16.msra.mxu0 %v1082
    %1451 = vmatprep.subr.bf16.mxu0 %v1091
    %1452 = vmatpush1.bf16.msra.mxu0 %v1090
    %1453 = vmatprep.subr.bf16.mxu0 %v1099
    %1454 = vmatpush1.bf16.msra.mxu0 %v1098
    %1455 = vmatprep.subr.bf16.mxu0 %v1107
    %1456 = vmatpush1.bf16.msra.mxu0 %v1106
    %1457 = vmatprep.subr.bf16.mxu0 0
    %1458 = vmatpush1.bf16.msra.mxu0 0
    %1459 = vmatprep.subr.bf16.mxu0 0
    %1460 = vmatpush1.bf16.msra.mxu0 0
    %1461 = vmatprep.subr.bf16.mxu0 0
    %1462 = vmatpush1.bf16.msra.mxu0 0
    %1463 = vmatprep.subr.bf16.mxu0 0
    %1464 = vmatpush1.bf16.msra.mxu0 0
    %1465 = vmatprep.subr.bf16.mxu0 0
    %1466 = vmatpush1.bf16.msra.mxu0 0
    %1467 = vmatprep.subr.bf16.mxu0 0
    %1468 = vmatpush1.bf16.msra.mxu0 0
    %1469 = vmatprep.subr.bf16.mxu0 0
    %1470 = vmatpush1.bf16.msra.mxu0 0
    %1471 = vmatprep.mubr.bf16.mxu0 %v1314
    %1472 = vmatmul.mubr.bf16.gmra.mrb[0].mxu0 %v307
    %v1473 = vpop.f32.mrb[0].mxu0
    %v1474 = vadd.f32 %v1433, %v1473
    %v1475 = vpop.f32.mrb[0].mxu0
    %v1476 = vadd.f32 %v1435, %v1475
    %v1477 = vpop.f32.mrb[0].mxu0
    %v1478 = vpop.f32.mrb[0].mxu0
    %1479 = vdwg.mxu0
    %1480 = vmatprep.subr.bf16.mxu0 %v917
    %1481 = vmatpush1.bf16.msra.mxu0 %v916
    %1482 = vmatprep.subr.bf16.mxu0 %v925
    %1483 = vmatpush1.bf16.msra.mxu0 %v924
    %1484 = vmatprep.subr.bf16.mxu0 %v933
    %1485 = vmatpush1.bf16.msra.mxu0 %v932
    %1486 = vmatprep.subr.bf16.mxu0 %v941
    %1487 = vmatpush1.bf16.msra.mxu0 %v940
    %1488 = vmatprep.subr.bf16.mxu0 %v949
    %1489 = vmatpush1.bf16.msra.mxu0 %v948
    %1490 = vmatprep.subr.bf16.mxu0 %v957
    %1491 = vmatpush1.bf16.msra.mxu0 %v956
    %1492 = vmatprep.subr.bf16.mxu0 %v965
    %1493 = vmatpush1.bf16.msra.mxu0 %v964
    %1494 = vmatprep.subr.bf16.mxu0 %v973
    %1495 = vmatpush1.bf16.msra.mxu0 %v972
    %1496 = vmatprep.subr.bf16.mxu0 %v981
    %1497 = vmatpush1.bf16.msra.mxu0 %v980
    %1498 = vmatprep.subr.bf16.mxu0 %v989
    %1499 = vmatpush1.bf16.msra.mxu0 %v988
    %1500 = vmatprep.subr.bf16.mxu0 %v997
    %1501 = vmatpush1.bf16.msra.mxu0 %v996
    %1502 = vmatprep.subr.bf16.mxu0 %v1005
    %1503 = vmatpush1.bf16.msra.mxu0 %v1004
    %1504 = vmatprep.subr.bf16.mxu0 %v1013
    %1505 = vmatpush1.bf16.msra.mxu0 %v1012
    %1506 = vmatprep.subr.bf16.mxu0 %v1021
    %1507 = vmatpush1.bf16.msra.mxu0 %v1020
    %1508 = vmatprep.subr.bf16.mxu0 %v1029
    %1509 = vmatpush1.bf16.msra.mxu0 %v1028
    %1510 = vmatprep.subr.bf16.mxu0 %v1037
    %1511 = vmatpush1.bf16.msra.mxu0 %v1036
    %1512 = vmatprep.mubr.bf16.mxu0 %v306
    %1513 = vmatmul.mubr.bf16.gmra.mrb[0].mxu0 %v305
    %v1514 = vpop.f32.mrb[0].mxu0
    %v1515 = vadd.f32 %v278, %v1514
    %v1516 = vpop.f32.mrb[0].mxu0
    %v1517 = vadd.f32 %v282, %v1516
    %v1518 = vpop.f32.mrb[0].mxu0
    %v1519 = vpop.f32.mrb[0].mxu0
    %1520 = vdwg.mxu0
    %1521 = vmatprep.subr.bf16.mxu0 %v1045
    %1522 = vmatpush1.bf16.msra.mxu0 %v1044
    %1523 = vmatprep.subr.bf16.mxu0 %v1053
    %1524 = vmatpush1.bf16.msra.mxu0 %v1052
    %1525 = vmatprep.subr.bf16.mxu0 %v1061
    %1526 = vmatpush1.bf16.msra.mxu0 %v1060
    %1527 = vmatprep.subr.bf16.mxu0 %v1069
    %1528 = vmatpush1.bf16.msra.mxu0 %v1068
    %1529 = vmatprep.subr.bf16.mxu0 %v1077
    %1530 = vmatpush1.bf16.msra.mxu0 %v1076
    %1531 = vmatprep.subr.bf16.mxu0 %v1085
    %1532 = vmatpush1.bf16.msra.mxu0 %v1084
    %1533 = vmatprep.subr.bf16.mxu0 %v1093
    %1534 = vmatpush1.bf16.msra.mxu0 %v1092
    %1535 = vmatprep.subr.bf16.mxu0 %v1101
    %1536 = vmatpush1.bf16.msra.mxu0 %v1100
    %1537 = vmatprep.subr.bf16.mxu0 %v1109
    %1538 = vmatpush1.bf16.msra.mxu0 %v1108
    %1539 = vmatprep.subr.bf16.mxu0 0
    %1540 = vmatpush1.bf16.msra.mxu0 0
    %1541 = vmatprep.subr.bf16.mxu0 0
    %1542 = vmatpush1.bf16.msra.mxu0 0
    %1543 = vmatprep.subr.bf16.mxu0 0
    %1544 = vmatpush1.bf16.msra.mxu0 0
    %1545 = vmatprep.subr.bf16.mxu0 0
    %1546 = vmatpush1.bf16.msra.mxu0 0
    %1547 = vmatprep.subr.bf16.mxu0 0
    %1548 = vmatpush1.bf16.msra.mxu0 0
    %1549 = vmatprep.subr.bf16.mxu0 0
    %1550 = vmatpush1.bf16.msra.mxu0 0
    %1551 = vmatprep.subr.bf16.mxu0 0
    %1552 = vmatpush1.bf16.msra.mxu0 0
    %1553 = vmatprep.mubr.bf16.mxu0 %v1314
    %1554 = vmatmul.mubr.bf16.gmra.mrb[0].mxu0 %v307
    %v1555 = vpop.f32.mrb[0].mxu0
    %v1556 = vadd.f32 %v1515, %v1555
    %v1557 = vpop.f32.mrb[0].mxu0
    %v1558 = vadd.f32 %v1517, %v1557
    %v1559 = vpop.f32.mrb[0].mxu0
    %v1560 = vpop.f32.mrb[0].mxu0
    %1561 = vdwg.mxu0
    %1562 = vmatprep.subr.bf16.mxu0 %v919
    %1563 = vmatpush1.bf16.msra.mxu0 %v918
    %1564 = vmatprep.subr.bf16.mxu0 %v927
    %1565 = vmatpush1.bf16.msra.mxu0 %v926
    %1566 = vmatprep.subr.bf16.mxu0 %v935
    %1567 = vmatpush1.bf16.msra.mxu0 %v934
    %1568 = vmatprep.subr.bf16.mxu0 %v943
    %1569 = vmatpush1.bf16.msra.mxu0 %v942
    %1570 = vmatprep.subr.bf16.mxu0 %v951
    %1571 = vmatpush1.bf16.msra.mxu0 %v950
    %1572 = vmatprep.subr.bf16.mxu0 %v959
    %1573 = vmatpush1.bf16.msra.mxu0 %v958
    %1574 = vmatprep.subr.bf16.mxu0 %v967
    %1575 = vmatpush1.bf16.msra.mxu0 %v966
    %1576 = vmatprep.subr.bf16.mxu0 %v975
    %1577 = vmatpush1.bf16.msra.mxu0 %v974
    %1578 = vmatprep.subr.bf16.mxu0 %v983
    %1579 = vmatpush1.bf16.msra.mxu0 %v982
    %1580 = vmatprep.subr.bf16.mxu0 %v991
    %1581 = vmatpush1.bf16.msra.mxu0 %v990
    %1582 = vmatprep.subr.bf16.mxu0 %v999
    %1583 = vmatpush1.bf16.msra.mxu0 %v998
    %1584 = vmatprep.subr.bf16.mxu0 %v1007
    %1585 = vmatpush1.bf16.msra.mxu0 %v1006
    %1586 = vmatprep.subr.bf16.mxu0 %v1015
    %1587 = vmatpush1.bf16.msra.mxu0 %v1014
    %1588 = vmatprep.subr.bf16.mxu0 %v1023
    %1589 = vmatpush1.bf16.msra.mxu0 %v1022
    %1590 = vmatprep.subr.bf16.mxu0 %v1031
    %1591 = vmatpush1.bf16.msra.mxu0 %v1030
    %1592 = vmatprep.subr.bf16.mxu0 %v1039
    %1593 = vmatpush1.bf16.msra.mxu0 %v1038
    %1594 = vmatprep.mubr.bf16.mxu0 %v306
    %1595 = vmatmul.mubr.bf16.gmra.mrb[0].mxu0 %v305
    %v1596 = vpop.f32.mrb[0].mxu0
    %v1597 = vadd.f32 %v286, %v1596
    %v1598 = vpop.f32.mrb[0].mxu0
    %v1599 = vadd.f32 %v290, %v1598
    %v1600 = vpop.f32.mrb[0].mxu0
    %v1601 = vpop.f32.mrb[0].mxu0
    %1602 = vdwg.mxu0
    %1603 = vmatprep.subr.bf16.mxu0 %v1047
    %1604 = vmatpush1.bf16.msra.mxu0 %v1046
    %1605 = vmatprep.subr.bf16.mxu0 %v1055
    %1606 = vmatpush1.bf16.msra.mxu0 %v1054
    %1607 = vmatprep.subr.bf16.mxu0 %v1063
    %1608 = vmatpush1.bf16.msra.mxu0 %v1062
    %1609 = vmatprep.subr.bf16.mxu0 %v1071
    %1610 = vmatpush1.bf16.msra.mxu0 %v1070
    %1611 = vmatprep.subr.bf16.mxu0 %v1079
    %1612 = vmatpush1.bf16.msra.mxu0 %v1078
    %1613 = vmatprep.subr.bf16.mxu0 %v1087
    %1614 = vmatpush1.bf16.msra.mxu0 %v1086
    %1615 = vmatprep.subr.bf16.mxu0 %v1095
    %1616 = vmatpush1.bf16.msra.mxu0 %v1094
    %1617 = vmatprep.subr.bf16.mxu0 %v1103
    %1618 = vmatpush1.bf16.msra.mxu0 %v1102
    %1619 = vmatprep.subr.bf16.mxu0 %v1111
    %1620 = vmatpush1.bf16.msra.mxu0 %v1110
    %1621 = vmatprep.subr.bf16.mxu0 0
    %1622 = vmatpush1.bf16.msra.mxu0 0
    %1623 = vmatprep.subr.bf16.mxu0 0
    %1624 = vmatpush1.bf16.msra.mxu0 0
    %1625 = vmatprep.subr.bf16.mxu0 0
    %1626 = vmatpush1.bf16.msra.mxu0 0
    %1627 = vmatprep.subr.bf16.mxu0 0
    %1628 = vmatpush1.bf16.msra.mxu0 0
    %1629 = vmatprep.subr.bf16.mxu0 0
    %1630 = vmatpush1.bf16.msra.mxu0 0
    %1631 = vmatprep.subr.bf16.mxu0 0
    %1632 = vmatpush1.bf16.msra.mxu0 0
    %1633 = vmatprep.subr.bf16.mxu0 0
    %1634 = vmatpush1.bf16.msra.mxu0 0
    %1635 = vmatprep.mubr.bf16.mxu0 %v1314
    %1636 = vmatmul.mubr.bf16.gmra.mrb[0].mxu0 %v307
    %v1637 = vpop.f32.mrb[0].mxu0
    %v1638 = vadd.f32 %v1597, %v1637
    %v1639 = vpop.f32.mrb[0].mxu0
    %v1640 = vadd.f32 %v1599, %v1639
    %v1641 = vpop.f32.mrb[0].mxu0
    %v1642 = vpop.f32.mrb[0].mxu0
    %1643 = vdwg.mxu0
    %v1644 = vmax.f32 %v1392, 0.0
    %v1645 = vmax.f32 %v1394, 0.0
    %v1646 = vmax.f32 %v1474, 0.0
    %v1647 = vmax.f32 %v1476, 0.0
    %v1648 = vmax.f32 %v1556, 0.0
    %v1649 = vmax.f32 %v1558, 0.0
    %v1650 = vmax.f32 %v1638, 0.0
    %v1651 = vmax.f32 %v1640, 0.0
    %v1652 = vpack.c.bf16 %v1644, %v1644
    %v1653 = vpack.c.bf16 %v1645, %v1645
    %v1654 = vpack.c.bf16 %v1646, %v1646
    %v1655 = vpack.c.bf16 %v1647, %v1647
    %v1656 = vpack.c.bf16 %v1648, %v1648
    %v1657 = vpack.c.bf16 %v1649, %v1649
    %v1658 = vpack.c.bf16 %v1650, %v1650
    %v1659 = vpack.c.bf16 %v1651, %v1651
    %v1660 = vld [vmem:[#allocation4] sm:$0xf]
    %v1661 = vld [vmem:[#allocation4 + $0x4] sm:$0xf]
    %v1662 = vld [vmem:[#allocation4 + $0x8] sm:$0xf]
    %v1663 = vld [vmem:[#allocation4 + $0xc] sm:$0xf]
    %v1664 = vld [vmem:[#allocation4 + $0x10] sm:$0xf]
    %v1665 = vld [vmem:[#allocation4 + $0x14] sm:$0xf]
    %v1666 = vld [vmem:[#allocation4 + $0x18] sm:$0xf]
    %v1667 = vld [vmem:[#allocation4 + $0x1c] sm:$0xf]
    %v1668 = vld [vmem:[#allocation4 + $0x20] sm:$0xf]
    %v1669 = vld [vmem:[#allocation4 + $0x24] sm:$0xf]
    %v1670 = vld [vmem:[#allocation4 + $0x28] sm:$0xf]
    %v1671 = vld [vmem:[#allocation4 + $0x2c] sm:$0xf]
    %v1672 = vld [vmem:[#allocation4 + $0x30] sm:$0xf]
    %v1673 = vld [vmem:[#allocation4 + $0x34] sm:$0xf]
    %v1674 = vld [vmem:[#allocation4 + $0x38] sm:$0xf]
    %v1675 = vld [vmem:[#allocation4 + $0x3c] sm:$0xf]
    %v1676 = vld [vmem:[#allocation4 + $0x40] sm:$0xf]
    %v1677 = vld [vmem:[#allocation4 + $0x44] sm:$0xf]
    %v1678 = vld [vmem:[#allocation4 + $0x48] sm:$0xf]
    %v1679 = vld [vmem:[#allocation4 + $0x4c] sm:$0xf]
    %v1680 = vld [vmem:[#allocation4 + $0x50] sm:$0xf]
    %v1681 = vld [vmem:[#allocation4 + $0x54] sm:$0xf]
    %v1682 = vld [vmem:[#allocation4 + $0x58] sm:$0xf]
    %v1683 = vld [vmem:[#allocation4 + $0x5c] sm:$0xf]
    %v1684 = vld [vmem:[#allocation4 + $0x60] sm:$0xf]
    %v1685 = vld [vmem:[#allocation4 + $0x64] sm:$0xf]
    %v1686 = vld [vmem:[#allocation4 + $0x68] sm:$0xf]
    %v1687 = vld [vmem:[#allocation4 + $0x6c] sm:$0xf]
    %v1688 = vld [vmem:[#allocation4 + $0x70] sm:$0xf]
    %v1689 = vld [vmem:[#allocation4 + $0x74] sm:$0xf]
    %v1690 = vld [vmem:[#allocation4 + $0x78] sm:$0xf]
    %v1691 = vld [vmem:[#allocation4 + $0x7c] sm:$0xf]
    %v1692 = vld [vmem:[#allocation4 + $0x80] sm:$0xf]
    %v1693 = vld [vmem:[#allocation4 + $0x84] sm:$0xf]
    %v1694 = vld [vmem:[#allocation4 + $0x88] sm:$0xf]
    %v1695 = vld [vmem:[#allocation4 + $0x8c] sm:$0xf]
    %v1696 = vld [vmem:[#allocation4 + $0x90] sm:$0xf]
    %v1697 = vld [vmem:[#allocation4 + $0x94] sm:$0xf]
    %v1698 = vld [vmem:[#allocation4 + $0x98] sm:$0xf]
    %v1699 = vld [vmem:[#allocation4 + $0x9c] sm:$0xf]
    %v1700 = vld [vmem:[#allocation4 + $0xa0] sm:$0xf]
    %v1701 = vld [vmem:[#allocation4 + $0xa4] sm:$0xf]
    %v1702 = vld [vmem:[#allocation4 + $0xa8] sm:$0xf]
    %v1703 = vld [vmem:[#allocation4 + $0xac] sm:$0xf]
    %v1704 = vld [vmem:[#allocation4 + $0xb0] sm:$0xf]
    %v1705 = vld [vmem:[#allocation4 + $0xb4] sm:$0xf]
    %v1706 = vld [vmem:[#allocation4 + $0xb8] sm:$0xf]
    %v1707 = vld [vmem:[#allocation4 + $0xbc] sm:$0xf]
    %v1708 = vld [vmem:[#allocation4 + $0xc0] sm:$0xf]
    %v1709 = vld [vmem:[#allocation4 + $0xc4] sm:$0xf]
    %v1710 = vld [vmem:[#allocation4 + $0xc8] sm:$0xf]
    %v1711 = vld [vmem:[#allocation4 + $0xcc] sm:$0xf]
    %v1712 = vld [vmem:[#allocation4 + $0xd0] sm:$0xf]
    %v1713 = vld [vmem:[#allocation4 + $0xd4] sm:$0xf]
    %v1714 = vld [vmem:[#allocation4 + $0xd8] sm:$0xf]
    %v1715 = vld [vmem:[#allocation4 + $0xdc] sm:$0xf]
    %v1716 = vld [vmem:[#allocation4 + $0xe0] sm:$0xf]
    %v1717 = vld [vmem:[#allocation4 + $0xe4] sm:$0xf]
    %v1718 = vld [vmem:[#allocation4 + $0xe8] sm:$0xf]
    %v1719 = vld [vmem:[#allocation4 + $0xec] sm:$0xf]
    %v1720 = vld [vmem:[#allocation4 + $0xf0] sm:$0xf]
    %v1721 = vld [vmem:[#allocation4 + $0xf4] sm:$0xf]
    %v1722 = vld [vmem:[#allocation4 + $0xf8] sm:$0xf]
    %v1723 = vld [vmem:[#allocation4 + $0xfc] sm:$0xf]
    %v1724 = vld [vmem:[#allocation4 + $0x100] sm:$0xf]
    %v1725 = vld [vmem:[#allocation4 + $0x104] sm:$0xf]
    %v1726 = vld [vmem:[#allocation4 + $0x108] sm:$0xf]
    %v1727 = vld [vmem:[#allocation4 + $0x10c] sm:$0xf]
    %v1728 = vld [vmem:[#allocation4 + $0x110] sm:$0xf]
    %v1729 = vld [vmem:[#allocation4 + $0x114] sm:$0xf]
    %v1730 = vld [vmem:[#allocation4 + $0x118] sm:$0xf]
    %v1731 = vld [vmem:[#allocation4 + $0x11c] sm:$0xf]
    %v1732 = vld [vmem:[#allocation4 + $0x120] sm:$0xf]
    %v1733 = vld [vmem:[#allocation4 + $0x124] sm:$0xf]
    %v1734 = vld [vmem:[#allocation4 + $0x128] sm:$0xf]
    %v1735 = vld [vmem:[#allocation4 + $0x12c] sm:$0xf]
    %v1736 = vld [vmem:[#allocation4 + $0x130] sm:$0xf]
    %v1737 = vld [vmem:[#allocation4 + $0x134] sm:$0xf]
    %v1738 = vld [vmem:[#allocation4 + $0x138] sm:$0xf]
    %v1739 = vld [vmem:[#allocation4 + $0x13c] sm:$0xf]
    %v1740 = vld [vmem:[#allocation4 + $0x140] sm:$0xf]
    %v1741 = vld [vmem:[#allocation4 + $0x144] sm:$0xf]
    %v1742 = vld [vmem:[#allocation4 + $0x148] sm:$0xf]
    %v1743 = vld [vmem:[#allocation4 + $0x14c] sm:$0xf]
    %v1744 = vld [vmem:[#allocation4 + $0x150] sm:$0xf]
    %v1745 = vld [vmem:[#allocation4 + $0x154] sm:$0xf]
    %v1746 = vld [vmem:[#allocation4 + $0x158] sm:$0xf]
    %v1747 = vld [vmem:[#allocation4 + $0x15c] sm:$0xf]
    %v1748 = vld [vmem:[#allocation4 + $0x160] sm:$0xf]
    %v1749 = vld [vmem:[#allocation4 + $0x164] sm:$0xf]
    %v1750 = vld [vmem:[#allocation4 + $0x168] sm:$0xf]
    %v1751 = vld [vmem:[#allocation4 + $0x16c] sm:$0xf]
    %v1752 = vld [vmem:[#allocation4 + $0x170] sm:$0xf]
    %v1753 = vld [vmem:[#allocation4 + $0x174] sm:$0xf]
    %v1754 = vld [vmem:[#allocation4 + $0x178] sm:$0xf]
    %v1755 = vld [vmem:[#allocation4 + $0x17c] sm:$0xf]
    %v1756 = vld [vmem:[#allocation4 + $0x180] sm:$0xf]
    %v1757 = vld [vmem:[#allocation4 + $0x184] sm:$0xf]
    %v1758 = vld [vmem:[#allocation4 + $0x188] sm:$0xf]
    %v1759 = vld [vmem:[#allocation4 + $0x18c] sm:$0xf]
    %v1760 = vld [vmem:[#allocation4 + $0x190] sm:$0xf]
    %v1761 = vld [vmem:[#allocation4 + $0x194] sm:$0xf]
    %v1762 = vld [vmem:[#allocation4 + $0x198] sm:$0xf]
    %v1763 = vld [vmem:[#allocation4 + $0x19c] sm:$0xf]
    %v1764 = vld [vmem:[#allocation4 + $0x1a0] sm:$0xf]
    %v1765 = vld [vmem:[#allocation4 + $0x1a4] sm:$0xf]
    %v1766 = vld [vmem:[#allocation4 + $0x1a8] sm:$0xf]
    %v1767 = vld [vmem:[#allocation4 + $0x1ac] sm:$0xf]
    %v1768 = vld [vmem:[#allocation4 + $0x1b0] sm:$0xf]
    %v1769 = vld [vmem:[#allocation4 + $0x1b4] sm:$0xf]
    %v1770 = vld [vmem:[#allocation4 + $0x1b8] sm:$0xf]
    %v1771 = vld [vmem:[#allocation4 + $0x1bc] sm:$0xf]
    %v1772 = vld [vmem:[#allocation4 + $0x1c0] sm:$0xf]
    %v1773 = vld [vmem:[#allocation4 + $0x1c4] sm:$0xf]
    %v1774 = vld [vmem:[#allocation4 + $0x1c8] sm:$0xf]
    %v1775 = vld [vmem:[#allocation4 + $0x1cc] sm:$0xf]
    %v1776 = vld [vmem:[#allocation4 + $0x1d0] sm:$0xf]
    %v1777 = vld [vmem:[#allocation4 + $0x1d4] sm:$0xf]
    %v1778 = vld [vmem:[#allocation4 + $0x1d8] sm:$0xf]
    %v1779 = vld [vmem:[#allocation4 + $0x1dc] sm:$0xf]
    %v1780 = vld [vmem:[#allocation4 + $0x1e0] sm:$0xf]
    %v1781 = vld [vmem:[#allocation4 + $0x1e4] sm:$0xf]
    %v1782 = vld [vmem:[#allocation4 + $0x1e8] sm:$0xf]
    %v1783 = vld [vmem:[#allocation4 + $0x1ec] sm:$0xf]
    %v1784 = vld [vmem:[#allocation4 + $0x1f0] sm:$0xf]
    %v1785 = vld [vmem:[#allocation4 + $0x1f4] sm:$0xf]
    %v1786 = vld [vmem:[#allocation4 + $0x1f8] sm:$0xf]
    %v1787 = vld [vmem:[#allocation4 + $0x1fc] sm:$0xf]
    %v1788 = vld [vmem:[%s4] sm:$0x1]
    %v1790 = vlaneseq
    %v1791 = vshrl.u32 %v1790, 7
    %v1792 = vsub.s32 0, %v1791
    %v1793 = vrot.slane %v1788, %v1792
    %v1923 = vunpack.c.l.b16 %v1660
    %v1924 = vunpack.c.l.b16 %v1661
    %v1925 = vunpack.c.l.b16 %v1662
    %v1926 = vunpack.c.l.b16 %v1663
    %v1927 = vunpack.c.l.b16 %v1664
    %v1928 = vunpack.c.l.b16 %v1665
    %v1929 = vunpack.c.l.b16 %v1666
    %v1930 = vunpack.c.l.b16 %v1667
    %v1931 = vunpack.c.l.b16 %v1668
    %v1932 = vunpack.c.l.b16 %v1669
    %v1933 = vunpack.c.l.b16 %v1670
    %v1934 = vunpack.c.l.b16 %v1671
    %v1935 = vunpack.c.l.b16 %v1672
    %v1936 = vunpack.c.l.b16 %v1673
    %v1937 = vunpack.c.l.b16 %v1674
    %v1938 = vunpack.c.l.b16 %v1675
    %v1939 = vunpack.c.l.b16 %v1676
    %v1940 = vunpack.c.l.b16 %v1677
    %v1941 = vunpack.c.l.b16 %v1678
    %v1942 = vunpack.c.l.b16 %v1679
    %v1943 = vunpack.c.l.b16 %v1680
    %v1944 = vunpack.c.l.b16 %v1681
    %v1945 = vunpack.c.l.b16 %v1682
    %v1946 = vunpack.c.l.b16 %v1683
    %v1947 = vunpack.c.l.b16 %v1684
    %v1948 = vunpack.c.l.b16 %v1685
    %v1949 = vunpack.c.l.b16 %v1686
    %v1950 = vunpack.c.l.b16 %v1687
    %v1951 = vunpack.c.l.b16 %v1688
    %v1952 = vunpack.c.l.b16 %v1689
    %v1953 = vunpack.c.l.b16 %v1690
    %v1954 = vunpack.c.l.b16 %v1691
    %v1955 = vunpack.c.l.b16 %v1692
    %v1956 = vunpack.c.l.b16 %v1693
    %v1957 = vunpack.c.l.b16 %v1694
    %v1958 = vunpack.c.l.b16 %v1695
    %v1959 = vunpack.c.l.b16 %v1696
    %v1960 = vunpack.c.l.b16 %v1697
    %v1961 = vunpack.c.l.b16 %v1698
    %v1962 = vunpack.c.l.b16 %v1699
    %v1963 = vunpack.c.l.b16 %v1700
    %v1964 = vunpack.c.l.b16 %v1701
    %v1965 = vunpack.c.l.b16 %v1702
    %v1966 = vunpack.c.l.b16 %v1703
    %v1967 = vunpack.c.l.b16 %v1704
    %v1968 = vunpack.c.l.b16 %v1705
    %v1969 = vunpack.c.l.b16 %v1706
    %v1970 = vunpack.c.l.b16 %v1707
    %v1971 = vunpack.c.l.b16 %v1708
    %v1972 = vunpack.c.l.b16 %v1709
    %v1973 = vunpack.c.l.b16 %v1710
    %v1974 = vunpack.c.l.b16 %v1711
    %v1975 = vunpack.c.l.b16 %v1712
    %v1976 = vunpack.c.l.b16 %v1713
    %v1977 = vunpack.c.l.b16 %v1714
    %v1978 = vunpack.c.l.b16 %v1715
    %v1979 = vunpack.c.l.b16 %v1716
    %v1980 = vunpack.c.l.b16 %v1717
    %v1981 = vunpack.c.l.b16 %v1718
    %v1982 = vunpack.c.l.b16 %v1719
    %v1983 = vunpack.c.l.b16 %v1720
    %v1984 = vunpack.c.l.b16 %v1721
    %v1985 = vunpack.c.l.b16 %v1722
    %v1986 = vunpack.c.l.b16 %v1723
    %v1987 = vunpack.c.l.b16 %v1724
    %v1988 = vunpack.c.l.b16 %v1725
    %v1989 = vunpack.c.l.b16 %v1726
    %v1990 = vunpack.c.l.b16 %v1727
    %v1991 = vunpack.c.l.b16 %v1728
    %v1992 = vunpack.c.l.b16 %v1729
    %v1993 = vunpack.c.l.b16 %v1730
    %v1994 = vunpack.c.l.b16 %v1731
    %v1995 = vunpack.c.l.b16 %v1732
    %v1996 = vunpack.c.l.b16 %v1733
    %v1997 = vunpack.c.l.b16 %v1734
    %v1998 = vunpack.c.l.b16 %v1735
    %v1999 = vunpack.c.l.b16 %v1736
    %v2000 = vunpack.c.l.b16 %v1737
    %v2001 = vunpack.c.l.b16 %v1738
    %v2002 = vunpack.c.l.b16 %v1739
    %v2003 = vunpack.c.l.b16 %v1740
    %v2004 = vunpack.c.l.b16 %v1741
    %v2005 = vunpack.c.l.b16 %v1742
    %v2006 = vunpack.c.l.b16 %v1743
    %v2007 = vunpack.c.l.b16 %v1744
    %v2008 = vunpack.c.l.b16 %v1745
    %v2009 = vunpack.c.l.b16 %v1746
    %v2010 = vunpack.c.l.b16 %v1747
    %v2011 = vunpack.c.l.b16 %v1748
    %v2012 = vunpack.c.l.b16 %v1749
    %v2013 = vunpack.c.l.b16 %v1750
    %v2014 = vunpack.c.l.b16 %v1751
    %v2015 = vunpack.c.l.b16 %v1752
    %v2016 = vunpack.c.l.b16 %v1753
    %v2017 = vunpack.c.l.b16 %v1754
    %v2018 = vunpack.c.l.b16 %v1755
    %v2019 = vunpack.c.l.b16 %v1756
    %v2020 = vunpack.c.l.b16 %v1757
    %v2021 = vunpack.c.l.b16 %v1758
    %v2022 = vunpack.c.l.b16 %v1759
    %v2023 = vunpack.c.l.b16 %v1760
    %v2024 = vunpack.c.l.b16 %v1761
    %v2025 = vunpack.c.l.b16 %v1762
    %v2026 = vunpack.c.l.b16 %v1763
    %v2027 = vunpack.c.l.b16 %v1764
    %v2028 = vunpack.c.l.b16 %v1765
    %v2029 = vunpack.c.l.b16 %v1766
    %v2030 = vunpack.c.l.b16 %v1767
    %v2031 = vunpack.c.l.b16 %v1768
    %v2032 = vunpack.c.l.b16 %v1769
    %v2033 = vunpack.c.l.b16 %v1770
    %v2034 = vunpack.c.l.b16 %v1771
    %v2035 = vunpack.c.l.b16 %v1772
    %v2036 = vunpack.c.l.b16 %v1773
    %v2037 = vunpack.c.l.b16 %v1774
    %v2038 = vunpack.c.l.b16 %v1775
    %v2039 = vunpack.c.l.b16 %v1776
    %v2040 = vunpack.c.l.b16 %v1777
    %v2041 = vunpack.c.l.b16 %v1778
    %v2042 = vunpack.c.l.b16 %v1779
    %v2043 = vunpack.c.l.b16 %v1780
    %v2044 = vunpack.c.l.b16 %v1781
    %v2045 = vunpack.c.l.b16 %v1782
    %v2046 = vunpack.c.l.b16 %v1783
    %v2047 = vunpack.c.l.b16 %v1784
    %v2048 = vunpack.c.l.b16 %v1785
    %v2049 = vunpack.c.l.b16 %v1786
    %v2050 = vunpack.c.l.b16 %v1787
    %v2051 = vpack.c.b16 %v1924, %v1923
    %v2052 = vpack.c.b16 %v1926, %v1925
    %v2053 = vpack.c.b16 %v1928, %v1927
    %v2054 = vpack.c.b16 %v1930, %v1929
    %v2055 = vpack.c.b16 %v1932, %v1931
    %v2056 = vpack.c.b16 %v1934, %v1933
    %v2057 = vpack.c.b16 %v1936, %v1935
    %v2058 = vpack.c.b16 %v1938, %v1937
    %v2059 = vpack.c.b16 %v1940, %v1939
    %v2060 = vpack.c.b16 %v1942, %v1941
    %v2061 = vpack.c.b16 %v1944, %v1943
    %v2062 = vpack.c.b16 %v1946, %v1945
    %v2063 = vpack.c.b16 %v1948, %v1947
    %v2064 = vpack.c.b16 %v1950, %v1949
    %v2065 = vpack.c.b16 %v1952, %v1951
    %v2066 = vpack.c.b16 %v1954, %v1953
    %v2067 = vpack.c.b16 %v1956, %v1955
    %v2068 = vpack.c.b16 %v1958, %v1957
    %v2069 = vpack.c.b16 %v1960, %v1959
    %v2070 = vpack.c.b16 %v1962, %v1961
    %v2071 = vpack.c.b16 %v1964, %v1963
    %v2072 = vpack.c.b16 %v1966, %v1965
    %v2073 = vpack.c.b16 %v1968, %v1967
    %v2074 = vpack.c.b16 %v1970, %v1969
    %v2075 = vpack.c.b16 %v1972, %v1971
    %v2076 = vpack.c.b16 %v1974, %v1973
    %v2077 = vpack.c.b16 %v1976, %v1975
    %v2078 = vpack.c.b16 %v1978, %v1977
    %v2079 = vpack.c.b16 %v1980, %v1979
    %v2080 = vpack.c.b16 %v1982, %v1981
    %v2081 = vpack.c.b16 %v1984, %v1983
    %v2082 = vpack.c.b16 %v1986, %v1985
    %v2083 = vpack.c.b16 %v1988, %v1987
    %v2084 = vpack.c.b16 %v1990, %v1989
    %v2085 = vpack.c.b16 %v1992, %v1991
    %v2086 = vpack.c.b16 %v1994, %v1993
    %v2087 = vpack.c.b16 %v1996, %v1995
    %v2088 = vpack.c.b16 %v1998, %v1997
    %v2089 = vpack.c.b16 %v2000, %v1999
    %v2090 = vpack.c.b16 %v2002, %v2001
    %v2091 = vpack.c.b16 %v2004, %v2003
    %v2092 = vpack.c.b16 %v2006, %v2005
    %v2093 = vpack.c.b16 %v2008, %v2007
    %v2094 = vpack.c.b16 %v2010, %v2009
    %v2095 = vpack.c.b16 %v2012, %v2011
    %v2096 = vpack.c.b16 %v2014, %v2013
    %v2097 = vpack.c.b16 %v2016, %v2015
    %v2098 = vpack.c.b16 %v2018, %v2017
    %v2099 = vpack.c.b16 %v2020, %v2019
    %v2100 = vpack.c.b16 %v2022, %v2021
    %v2101 = vpack.c.b16 %v2024, %v2023
    %v2102 = vpack.c.b16 %v2026, %v2025
    %v2103 = vpack.c.b16 %v2028, %v2027
    %v2104 = vpack.c.b16 %v2030, %v2029
    %v2105 = vpack.c.b16 %v2032, %v2031
    %v2106 = vpack.c.b16 %v2034, %v2033
    %v2107 = vpack.c.b16 %v2036, %v2035
    %v2108 = vpack.c.b16 %v2038, %v2037
    %v2109 = vpack.c.b16 %v2040, %v2039
    %v2110 = vpack.c.b16 %v2042, %v2041
    %v2111 = vpack.c.b16 %v2044, %v2043
    %v2112 = vpack.c.b16 %v2046, %v2045
    %v2113 = vpack.c.b16 %v2048, %v2047
    %v2114 = vpack.c.b16 %v2050, %v2049
    %2179 = vmatprep.subr.bf16.mxu0 0
    %2180 = vmatpush1.bf16.msra.mxu0 %v2051
    %2181 = vmatprep.subr.bf16.mxu0 0
    %2182 = vmatpush1.bf16.msra.mxu0 %v2052
    %2183 = vmatprep.subr.bf16.mxu0 0
    %2184 = vmatpush1.bf16.msra.mxu0 %v2053
    %2185 = vmatprep.subr.bf16.mxu0 0
    %2186 = vmatpush1.bf16.msra.mxu0 %v2054
    %2187 = vmatprep.subr.bf16.mxu0 0
    %2188 = vmatpush1.bf16.msra.mxu0 %v2055
    %2189 = vmatprep.subr.bf16.mxu0 0
    %2190 = vmatpush1.bf16.msra.mxu0 %v2056
    %2191 = vmatprep.subr.bf16.mxu0 0
    %2192 = vmatpush1.bf16.msra.mxu0 %v2057
    %2193 = vmatprep.subr.bf16.mxu0 0
    %2194 = vmatpush1.bf16.msra.mxu0 %v2058
    %2195 = vmatprep.subr.bf16.mxu0 0
    %2196 = vmatpush1.bf16.msra.mxu0 %v2059
    %2197 = vmatprep.subr.bf16.mxu0 0
    %2198 = vmatpush1.bf16.msra.mxu0 %v2060
    %2199 = vmatprep.subr.bf16.mxu0 0
    %2200 = vmatpush1.bf16.msra.mxu0 %v2061
    %2201 = vmatprep.subr.bf16.mxu0 0
    %2202 = vmatpush1.bf16.msra.mxu0 %v2062
    %2203 = vmatprep.subr.bf16.mxu0 0
    %2204 = vmatpush1.bf16.msra.mxu0 %v2063
    %2205 = vmatprep.subr.bf16.mxu0 0
    %2206 = vmatpush1.bf16.msra.mxu0 %v2064
    %2207 = vmatprep.subr.bf16.mxu0 0
    %2208 = vmatpush1.bf16.msra.mxu0 %v2065
    %2209 = vmatprep.subr.bf16.mxu0 0
    %2210 = vmatpush1.bf16.msra.mxu0 %v2066
    %2211 = vmatprep.mubr.bf16.mxu0 %v1653
    %2212 = vmatmul.mubr.bf16.gmra.mrb[0].mxu0 %v1652
    %v2213 = vpop.f32.mrb[0].mxu0
    %v2214 = vadd.f32 %v1793, %v2213
    %v2215 = vpop.f32.mrb[0].mxu0
    %v2216 = vpop.f32.mrb[0].mxu0
    %v2217 = vpop.f32.mrb[0].mxu0
    %2218 = vdwg.mxu0
    %2219 = vmatprep.subr.bf16.mxu0 0
    %2220 = vmatpush1.bf16.msra.mxu0 %v2067
    %2221 = vmatprep.subr.bf16.mxu0 0
    %2222 = vmatpush1.bf16.msra.mxu0 %v2068
    %2223 = vmatprep.subr.bf16.mxu0 0
    %2224 = vmatpush1.bf16.msra.mxu0 %v2069
    %2225 = vmatprep.subr.bf16.mxu0 0
    %2226 = vmatpush1.bf16.msra.mxu0 %v2070
    %2227 = vmatprep.subr.bf16.mxu0 0
    %2228 = vmatpush1.bf16.msra.mxu0 %v2071
    %2229 = vmatprep.subr.bf16.mxu0 0
    %2230 = vmatpush1.bf16.msra.mxu0 %v2072
    %2231 = vmatprep.subr.bf16.mxu0 0
    %2232 = vmatpush1.bf16.msra.mxu0 %v2073
    %2233 = vmatprep.subr.bf16.mxu0 0
    %2234 = vmatpush1.bf16.msra.mxu0 %v2074
    %2235 = vmatprep.subr.bf16.mxu0 0
    %2236 = vmatpush1.bf16.msra.mxu0 %v2075
    %2237 = vmatprep.subr.bf16.mxu0 0
    %2238 = vmatpush1.bf16.msra.mxu0 %v2076
    %2239 = vmatprep.subr.bf16.mxu0 0
    %2240 = vmatpush1.bf16.msra.mxu0 %v2077
    %2241 = vmatprep.subr.bf16.mxu0 0
    %2242 = vmatpush1.bf16.msra.mxu0 %v2078
    %2243 = vmatprep.subr.bf16.mxu0 0
    %2244 = vmatpush1.bf16.msra.mxu0 %v2079
    %2245 = vmatprep.subr.bf16.mxu0 0
    %2246 = vmatpush1.bf16.msra.mxu0 %v2080
    %2247 = vmatprep.subr.bf16.mxu0 0
    %2248 = vmatpush1.bf16.msra.mxu0 %v2081
    %2249 = vmatprep.subr.bf16.mxu0 0
    %2250 = vmatpush1.bf16.msra.mxu0 %v2082
    %2251 = vmatprep.mubr.bf16.mxu0 %v1655
    %2252 = vmatmul.mubr.bf16.gmra.mrb[0].mxu0 %v1654
    %v2253 = vpop.f32.mrb[0].mxu0
    %v2254 = vadd.f32 %v2214, %v2253
    %v2255 = vpop.f32.mrb[0].mxu0
    %v2256 = vpop.f32.mrb[0].mxu0
    %v2257 = vpop.f32.mrb[0].mxu0
    %2258 = vdwg.mxu0
    %2259 = vmatprep.subr.bf16.mxu0 0
    %2260 = vmatpush1.bf16.msra.mxu0 %v2083
    %2261 = vmatprep.subr.bf16.mxu0 0
    %2262 = vmatpush1.bf16.msra.mxu0 %v2084
    %2263 = vmatprep.subr.bf16.mxu0 0
    %2264 = vmatpush1.bf16.msra.mxu0 %v2085
    %2265 = vmatprep.subr.bf16.mxu0 0
    %2266 = vmatpush1.bf16.msra.mxu0 %v2086
    %2267 = vmatprep.subr.bf16.mxu0 0
    %2268 = vmatpush1.bf16.msra.mxu0 %v2087
    %2269 = vmatprep.subr.bf16.mxu0 0
    %2270 = vmatpush1.bf16.msra.mxu0 %v2088
    %2271 = vmatprep.subr.bf16.mxu0 0
    %2272 = vmatpush1.bf16.msra.mxu0 %v2089
    %2273 = vmatprep.subr.bf16.mxu0 0
    %2274 = vmatpush1.bf16.msra.mxu0 %v2090
    %2275 = vmatprep.subr.bf16.mxu0 0
    %2276 = vmatpush1.bf16.msra.mxu0 %v2091
    %2277 = vmatprep.subr.bf16.mxu0 0
    %2278 = vmatpush1.bf16.msra.mxu0 %v2092
    %2279 = vmatprep.subr.bf16.mxu0 0
    %2280 = vmatpush1.bf16.msra.mxu0 %v2093
    %2281 = vmatprep.subr.bf16.mxu0 0
    %2282 = vmatpush1.bf16.msra.mxu0 %v2094
    %2283 = vmatprep.subr.bf16.mxu0 0
    %2284 = vmatpush1.bf16.msra.mxu0 %v2095
    %2285 = vmatprep.subr.bf16.mxu0 0
    %2286 = vmatpush1.bf16.msra.mxu0 %v2096
    %2287 = vmatprep.subr.bf16.mxu0 0
    %2288 = vmatpush1.bf16.msra.mxu0 %v2097
    %2289 = vmatprep.subr.bf16.mxu0 0
    %2290 = vmatpush1.bf16.msra.mxu0 %v2098
    %2291 = vmatprep.mubr.bf16.mxu0 %v1657
    %2292 = vmatmul.mubr.bf16.gmra.mrb[0].mxu0 %v1656
    %v2293 = vpop.f32.mrb[0].mxu0
    %v2294 = vadd.f32 %v2254, %v2293
    %v2295 = vpop.f32.mrb[0].mxu0
    %v2296 = vpop.f32.mrb[0].mxu0
    %v2297 = vpop.f32.mrb[0].mxu0
    %2298 = vdwg.mxu0
    %2299 = vmatprep.subr.bf16.mxu0 0
    %2300 = vmatpush1.bf16.msra.mxu0 %v2099
    %2301 = vmatprep.subr.bf16.mxu0 0
    %2302 = vmatpush1.bf16.msra.mxu0 %v2100
    %2303 = vmatprep.subr.bf16.mxu0 0
    %2304 = vmatpush1.bf16.msra.mxu0 %v2101
    %2305 = vmatprep.subr.bf16.mxu0 0
    %2306 = vmatpush1.bf16.msra.mxu0 %v2102
    %2307 = vmatprep.subr.bf16.mxu0 0
    %2308 = vmatpush1.bf16.msra.mxu0 %v2103
    %2309 = vmatprep.subr.bf16.mxu0 0
    %2310 = vmatpush1.bf16.msra.mxu0 %v2104
    %2311 = vmatprep.subr.bf16.mxu0 0
    %2312 = vmatpush1.bf16.msra.mxu0 %v2105
    %2313 = vmatprep.subr.bf16.mxu0 0
    %2314 = vmatpush1.bf16.msra.mxu0 %v2106
    %2315 = vmatprep.subr.bf16.mxu0 0
    %2316 = vmatpush1.bf16.msra.mxu0 %v2107
    %2317 = vmatprep.subr.bf16.mxu0 0
    %2318 = vmatpush1.bf16.msra.mxu0 %v2108
    %2319 = vmatprep.subr.bf16.mxu0 0
    %2320 = vmatpush1.bf16.msra.mxu0 %v2109
    %2321 = vmatprep.subr.bf16.mxu0 0
    %2322 = vmatpush1.bf16.msra.mxu0 %v2110
    %2323 = vmatprep.subr.bf16.mxu0 0
    %2324 = vmatpush1.bf16.msra.mxu0 %v2111
    %2325 = vmatprep.subr.bf16.mxu0 0
    %2326 = vmatpush1.bf16.msra.mxu0 %v2112
    %2327 = vmatprep.subr.bf16.mxu0 0
    %2328 = vmatpush1.bf16.msra.mxu0 %v2113
    %2329 = vmatprep.subr.bf16.mxu0 0
    %2330 = vmatpush1.bf16.msra.mxu0 %v2114
    %2331 = vmatprep.mubr.bf16.mxu0 %v1659
    %2332 = vmatmul.mubr.bf16.gmra.mrb[0].mxu0 %v1658
    %v2333 = vpop.f32.mrb[0].mxu0
    %v2334 = vadd.f32 %v2294, %v2333
    %v2335 = vpop.f32.mrb[0].mxu0
    %v2336 = vpop.f32.mrb[0].mxu0
    %v2337 = vpop.f32.mrb[0].mxu0
    %2338 = vdwg.mxu0
    %v2339 = vmax.f32 %v2334, 0.0
    %v2340 = vpack.c.bf16 %v2339, %v2339
    %v2341 = vld [vmem:[%s5] sm:$0xf]
    %v2342 = vld [vmem:[%s5 + $0x4] sm:$0xf]
    %v2343 = vld [vmem:[%s5 + $0x8] sm:$0xf]
    %v2344 = vld [vmem:[%s5 + $0xc] sm:$0xf]
    %v2345 = vld [vmem:[%s5 + $0x10] sm:$0xf]
    %v2346 = vld [vmem:[%s5 + $0x14] sm:$0xf]
    %v2347 = vld [vmem:[%s5 + $0x18] sm:$0xf]
    %v2348 = vld [vmem:[%s5 + $0x1c] sm:$0xf]
    %v2349 = vld [vmem:[%s5 + $0x20] sm:$0xf]
    %v2350 = vld [vmem:[%s5 + $0x24] sm:$0xf]
    %v2351 = vld [vmem:[%s5 + $0x28] sm:$0xf]
    %v2352 = vld [vmem:[%s5 + $0x2c] sm:$0xf]
    %v2353 = vld [vmem:[%s5 + $0x30] sm:$0xf]
    %v2354 = vld [vmem:[%s5 + $0x34] sm:$0xf]
    %v2355 = vld [vmem:[%s5 + $0x38] sm:$0xf]
    %v2356 = vld [vmem:[%s5 + $0x3c] sm:$0xf]
    %v2357 = vld [vmem:[%s6] sm:$0x1]
    %v2359 = vlaneseq
    %v2360 = vshrl.u32 %v2359, 7
    %v2361 = vsub.s32 0, %v2360
    %v2362 = vrot.slane %v2357, %v2361
    %v2380 = vunpack.c.l.b16 %v2341
    %v2381 = vunpack.c.l.b16 %v2342
    %v2382 = vunpack.c.l.b16 %v2343
    %v2383 = vunpack.c.l.b16 %v2344
    %v2384 = vunpack.c.l.b16 %v2345
    %v2385 = vunpack.c.l.b16 %v2346
    %v2386 = vunpack.c.l.b16 %v2347
    %v2387 = vunpack.c.l.b16 %v2348
    %v2388 = vunpack.c.l.b16 %v2349
    %v2389 = vunpack.c.l.b16 %v2350
    %v2390 = vunpack.c.l.b16 %v2351
    %v2391 = vunpack.c.l.b16 %v2352
    %v2392 = vunpack.c.l.b16 %v2353
    %v2393 = vunpack.c.l.b16 %v2354
    %v2394 = vunpack.c.l.b16 %v2355
    %v2395 = vunpack.c.l.b16 %v2356
    %v2396 = vpack.c.b16 %v2381, %v2380
    %v2397 = vpack.c.b16 %v2383, %v2382
    %v2398 = vpack.c.b16 %v2385, %v2384
    %v2399 = vpack.c.b16 %v2387, %v2386
    %v2400 = vpack.c.b16 %v2389, %v2388
    %v2401 = vpack.c.b16 %v2391, %v2390
    %v2402 = vpack.c.b16 %v2393, %v2392
    %v2403 = vpack.c.b16 %v2395, %v2394
    %2412 = vmatprep.subr.bf16.mxu0 0
    %2413 = vmatpush1.bf16.msra.mxu0 %v2396
    %2414 = vmatprep.subr.bf16.mxu0 0
    %2415 = vmatpush1.bf16.msra.mxu0 %v2397
    %2416 = vmatprep.subr.bf16.mxu0 0
    %2417 = vmatpush1.bf16.msra.mxu0 %v2398
    %2418 = vmatprep.subr.bf16.mxu0 0
    %2419 = vmatpush1.bf16.msra.mxu0 %v2399
    %2420 = vmatprep.subr.bf16.mxu0 0
    %2421 = vmatpush1.bf16.msra.mxu0 %v2400
    %2422 = vmatprep.subr.bf16.mxu0 0
    %2423 = vmatpush1.bf16.msra.mxu0 %v2401
    %2424 = vmatprep.subr.bf16.mxu0 0
    %2425 = vmatpush1.bf16.msra.mxu0 %v2402
    %2426 = vmatprep.subr.bf16.mxu0 0
    %2427 = vmatpush1.bf16.msra.mxu0 %v2403
    %2428 = vmatprep.subr.bf16.mxu0 0
    %2429 = vmatpush1.bf16.msra.mxu0 0
    %2430 = vmatprep.subr.bf16.mxu0 0
    %2431 = vmatpush1.bf16.msra.mxu0 0
    %2432 = vmatprep.subr.bf16.mxu0 0
    %2433 = vmatpush1.bf16.msra.mxu0 0
    %2434 = vmatprep.subr.bf16.mxu0 0
    %2435 = vmatpush1.bf16.msra.mxu0 0
    %2436 = vmatprep.subr.bf16.mxu0 0
    %2437 = vmatpush1.bf16.msra.mxu0 0
    %2438 = vmatprep.subr.bf16.mxu0 0
    %2439 = vmatpush1.bf16.msra.mxu0 0
    %2440 = vmatprep.subr.bf16.mxu0 0
    %2441 = vmatpush1.bf16.msra.mxu0 0
    %2442 = vmatprep.subr.bf16.mxu0 0
    %2443 = vmatpush1.bf16.msra.mxu0 0
    %2444 = vmatprep.mubr.bf16.mxu0 0
    %2445 = vmatmul.mubr.bf16.gmra.mrb[0].mxu0 %v2340
    %v2446 = vpop.f32.mrb[0].mxu0
    %v2447 = vadd.f32 %v2362, %v2446
    %v2448 = vpop.f32.mrb[0].mxu0
    %v2449 = vpop.f32.mrb[0].mxu0
    %v2450 = vpop.f32.mrb[0].mxu0
    %2451 = vdwg.mxu0
    %2452 = vst [vmem:[%s7] sm:$0xff] %v2447
    // Predicated region
    $region38: #{soft_q_forward_padded.1} parent=1 // pred_check
      _
    $region39: #{soft_q_forward_padded.1} parent=1 // pred_check_branch
      %2454 = sbr.rel (0) target = $region41
    $region40: #{soft_q_forward_padded.1} parent=1 // pred_region
      _
    $region41: #{soft_q_forward_padded.1} parent=1 // pred_fallthru
      _
    // Predicated region
    $region42: #{soft_q_forward_padded.1} parent=1 // pred_check
      _
    $region43: #{soft_q_forward_padded.1} parent=1 // pred_check_branch
      %2456 = sbr.rel (0) target = $region45
    $region44: #{soft_q_forward_padded.1} parent=1 // pred_region
      _
    $region45: #{soft_q_forward_padded.1} parent=1 // pred_fallthru
      _
    %2457 = vsyncpa [#allocation3], 1
    %2458 = vsyncpa [#allocation5], 1

</llo_original>
